<compile_context>
chip_gen: v5e
topology: v5e:2x2
jax: 0.10.0
libtpu: 0.0.40
codegen_flags: <defaults>
</compile_context>

<pallas_src>
import functools

import jax
import jax.numpy as jnp
from jax import lax
from jax.experimental import pallas as pl
from jax.experimental.pallas import tpu as pltpu

NB_HIDDEN = 100
BN_EPS = 1e-5

# Spatial sizes implied by the architecture (flatten target 32*11*2 => 39x2 input)
H_IN, W_IN = 39, 2
H1, H1P = 40, 20        # conv1 out H, pool1 out H
H2, H2P = 21, 10        # conv2 out H, pool2 out H
H3 = 11                 # conv3 out H
C1, C2, C3 = 16, 16, 32


# ----------------------------------------------------------------------------
# In-kernel selector builders (0/1 matrices from broadcasted_iota)
# ----------------------------------------------------------------------------
def _shift_selector(h_out, h_in, dh):
    """S[i, j] = 1 where j == clip(i + dh - 1, 0, h_in-1): replicate-pad + tap shift."""
    ii = lax.broadcasted_iota(jnp.int32, (h_out, h_in), 0)
    jj = lax.broadcasted_iota(jnp.int32, (h_out, h_in), 1)
    tgt = jnp.clip(ii + (dh - 1), 0, h_in - 1)
    return (jj == tgt).astype(jnp.float32)


def _pool_selector(h_out, h_in, parity):
    """P[i, j] = 1 where j == 2*i + parity: even/odd row selection for 2x2 max-pool."""
    ii = lax.broadcasted_iota(jnp.int32, (h_out, h_in), 0)
    jj = lax.broadcasted_iota(jnp.int32, (h_out, h_in), 1)
    return (jj == 2 * ii + parity).astype(jnp.float32)


# ----------------------------------------------------------------------------
# Fused forward kernel (one grid step == one sample, everything VMEM-resident)
# ----------------------------------------------------------------------------
def _net_kernel(x_ref, w1_ref, aff1_ref, w2a_ref, w2b_ref, aff2_ref,
                w3a_ref, w3b_ref, b3_ref,
                wfc1_ref, bfc1_ref, wfc2_ref, bfc2_ref,
                wfc3_ref, bfc3_ref, wfc4_ref, bfc4_ref, o_ref):
    dot = functools.partial(jnp.dot, preferred_element_type=jnp.float32)

    x = x_ref[0, 0]                                       # (39, 2) f32

    # ---- conv1 (1 -> 16, k=2, replicate pad) -------------------------------
    w1 = w1_ref[...]                                      # (4,16); rows (dh,dw)
    t10 = _shift_selector(H1, H_IN, 0)                    # (40,39)
    t11 = _shift_selector(H1, H_IN, 1)
    xs0 = dot(t10, x)                                     # (40,2): H-shift dh=0
    xs1 = dot(t11, x)                                     # (40,2): H-shift dh=1
    w00, w01 = w1[0:1, :], w1[1:2, :]
    w10, w11 = w1[2:3, :], w1[3:4, :]
    c0s0, c1s0 = xs0[:, 0:1], xs0[:, 1:2]
    c0s1, c1s1 = xs1[:, 0:1], xs1[:, 1:2]
    # output width column 0 sees (c0, c0); column 1 sees (c0, c1)
    o1_w0 = c0s0 * (w00 + w01) + c0s1 * (w10 + w11)       # (40,16)
    o1_w1 = c0s0 * w00 + c1s0 * w01 + c0s1 * w10 + c1s1 * w11
    m1 = jnp.maximum(o1_w0, o1_w1)                        # max over pooled width

    # ---- maxpool1 (2x2) + bn1(eval) + relu (conv bias folded into shift) ----
    sel_e1 = _pool_selector(H1P, H1, 0)                   # (20,40)
    sel_o1 = _pool_selector(H1P, H1, 1)
    p1 = jnp.maximum(dot(sel_e1, m1), dot(sel_o1, m1))    # (20,16)
    x1 = jnp.maximum(p1 * aff1_ref[0:1, :] + aff1_ref[1:2, :], 0.0)

    # ---- conv2 (16 -> 16): width-1 input => both out columns identical -----
    t20 = _shift_selector(H2, H1P, 0)                     # (21,20)
    t21 = _shift_selector(H2, H1P, 1)
    b2 = dot(dot(t20, x1), w2a_ref[...]) + dot(dot(t21, x1), w2b_ref[...])  # (21,16)

    # ---- maxpool2 (2x2) + bn2(eval) + relu ----------------------------------
    sel_e2 = _pool_selector(H2P, H2, 0)                   # (10,21)
    sel_o2 = _pool_selector(H2P, H2, 1)
    p2 = jnp.maximum(dot(sel_e2, b2), dot(sel_o2, b2))    # (10,16)
    x2 = jnp.maximum(p2 * aff2_ref[0:1, :] + aff2_ref[1:2, :], 0.0)

    # ---- conv3 (16 -> 32) + bn3 + relu (BN folded into weights/bias) -------
    t30 = _shift_selector(H3, H2P, 0)                     # (11,10)
    t31 = _shift_selector(H3, H2P, 1)
    a3 = dot(dot(t30, x2), w3a_ref[...]) + dot(dot(t31, x2), w3b_ref[...]) \
        + b3_ref[...]
    a3 = jnp.maximum(a3, 0.0)                             # (11,32)

    # ---- fc1: NCHW flatten + width duplication folded into wfc1 rows -------
    # TODO(synk): Dropout(0.4) is identity in eval mode; not applied.
    acc = bfc1_ref[...]                                   # (1,200)
    for h in range(H3):                                   # unrolled, 11 tiny dots
        acc = acc + dot(a3[h:h + 1, :], wfc1_ref[h * C3:(h + 1) * C3, :])
    a_fc1 = jnp.maximum(acc, 0.0)

    a_fc2 = jnp.maximum(dot(a_fc1, wfc2_ref[...]) + bfc2_ref[...], 0.0)
    a_fc3 = jnp.maximum(dot(a_fc2, wfc3_ref[...]) + bfc3_ref[...], 0.0)
    logits = dot(a_fc3, wfc4_ref[...]) + bfc4_ref[...]    # (1,3)

    # softmax(dim=1) — exact division to keep rows summing to 1
    z = logits - jnp.max(logits, axis=-1, keepdims=True)
    e = jnp.exp(z)
    o_ref[0] = e / jnp.sum(e, axis=-1, keepdims=True)


# ----------------------------------------------------------------------------
# One-time parameter preparation (all folding/transposes hoisted off hot path)
# ----------------------------------------------------------------------------
def prepare_params(p):
    f32 = jnp.float32

    def bn_fold(name):
        s = p[f"{name}_gamma"].astype(f32) / jnp.sqrt(p[f"{name}_var"].astype(f32) + BN_EPS)
        t = p[f"{name}_beta"].astype(f32) - p[f"{name}_mean"].astype(f32) * s
        return s, t

    s1, t1 = bn_fold("bn1")
    s2, t2 = bn_fold("bn2")
    s3, t3 = bn_fold("bn3")

    w1 = p["w_conv1"].astype(f32)                         # (16,1,2,2)
    w1_taps = jnp.stack([w1[:, 0, dh, dw] for dh in range(2) for dw in range(2)],
                        axis=0)                           # (4,16)
    aff1 = jnp.stack([s1, s1 * p["b_conv1"].astype(f32) + t1], axis=0)   # (2,16)

    w2 = p["w_conv2"].astype(f32)                         # (16,16,2,2)
    w2_dh0 = (w2[:, :, 0, 0] + w2[:, :, 0, 1]).T          # (Cin,Cout) = (16,16)
    w2_dh1 = (w2[:, :, 1, 0] + w2[:, :, 1, 1]).T
    aff2 = jnp.stack([s2, s2 * p["b_conv2"].astype(f32) + t2], axis=0)

    w3 = p["w_conv3"].astype(f32)                         # (32,16,2,2)
    w3_dh0 = ((w3[:, :, 0, 0] + w3[:, :, 0, 1]) * s3[:, None]).T          # (16,32)
    w3_dh1 = ((w3[:, :, 1, 0] + w3[:, :, 1, 1]) * s3[:, None]).T
    b3 = (s3 * p["b_conv3"].astype(f32) + t3).reshape(1, C3)              # (1,32)

    # fc1 weight: PyTorch flatten index = c*22 + 2h + w; both w columns of the
    # conv3 output are identical -> sum over w, re-order rows to (h*32 + c).
    wfc1 = p["w_fc1"].astype(f32).reshape(2 * NB_HIDDEN, C3, H3, 2).sum(axis=3)
    wfc1 = jnp.transpose(wfc1, (2, 1, 0)).reshape(H3 * C3, 2 * NB_HIDDEN)  # (352,200)

    return dict(
        w1_taps=w1_taps, aff1=aff1,
        w2_dh0=w2_dh0, w2_dh1=w2_dh1, aff2=aff2,
        w3_dh0=w3_dh0, w3_dh1=w3_dh1, b3=b3,
        wfc1=wfc1, bfc1=p["b_fc1"].astype(f32).reshape(1, -1),
        wfc2=p["w_fc2"].astype(f32).T, bfc2=p["b_fc2"].astype(f32).reshape(1, -1),
        wfc3=p["w_fc3"].astype(f32).T, bfc3=p["b_fc3"].astype(f32).reshape(1, -1),
        wfc4=p["w_fc4"].astype(f32).T, bfc4=p["b_fc4"].astype(f32).reshape(1, -1),
    )


# ----------------------------------------------------------------------------
# Forward pass: one fused pallas_call, grid over the batch
# ----------------------------------------------------------------------------
@jax.jit
def net_forward(prepared, x_nchw):
    n = x_nchw.shape[0]
    x = x_nchw.astype(jnp.float32)
    weights = [
        prepared["w1_taps"], prepared["aff1"],
        prepared["w2_dh0"], prepared["w2_dh1"], prepared["aff2"],
        prepared["w3_dh0"], prepared["w3_dh1"], prepared["b3"],
        prepared["wfc1"], prepared["bfc1"],
        prepared["wfc2"], prepared["bfc2"],
        prepared["wfc3"], prepared["bfc3"],
        prepared["wfc4"], prepared["bfc4"],
    ]
    in_specs = [pl.BlockSpec((1, 1, H_IN, W_IN), lambda i: (i, 0, 0, 0))]
    in_specs += [pl.BlockSpec(w.shape, lambda i: (0, 0)) for w in weights]

    out = pl.pallas_call(
        _net_kernel,
        out_shape=jax.ShapeDtypeStruct((n, 1, 3), jnp.float32),
        grid=(n,),
        in_specs=in_specs,
        out_specs=pl.BlockSpec((1, 1, 3), lambda i: (i, 0, 0)),
        compiler_params=pltpu.CompilerParams(
            dimension_semantics=("parallel",)),
    )(x, *weights)
    return out.reshape(n, 3)


# ----------------------------------------------------------------------------
# Deterministic parameter init (PyTorch-style uniform(-1/sqrt(fan_in), ...))
# ----------------------------------------------------------------------------
def init_params(key):
    def unif(k, shape, fan_in):
        bound = 1.0 / jnp.sqrt(float(fan_in))
        return jax.random.uniform(k, shape, jnp.float32, -bound, bound)

    ks = jax.random.split(key, 32)
    p = {}
    p["w_conv1"] = unif(ks[0], (16, 1, 2, 2), 1 * 4)
    p["b_conv1"] = unif(ks[1], (16,), 1 * 4)
    p["w_conv2"] = unif(ks[2], (16, 16, 2, 2), 16 * 4)
    p["b_conv2"] = unif(ks[3], (16,), 16 * 4)
    p["w_conv3"] = unif(ks[4], (32, 16, 2, 2), 16 * 4)
    p["b_conv3"] = unif(ks[5], (32,), 16 * 4)
    kbn = iter(jax.random.split(ks[6], 12))
    for c, name in ((16, "bn1"), (16, "bn2"), (32, "bn3")):
        p[f"{name}_gamma"] = jax.random.uniform(next(kbn), (c,), jnp.float32, 0.5, 1.5)
        p[f"{name}_beta"] = 0.1 * jax.random.normal(next(kbn), (c,), jnp.float32)
        p[f"{name}_mean"] = 0.1 * jax.random.normal(next(kbn), (c,), jnp.float32)
        p[f"{name}_var"] = jax.random.uniform(next(kbn), (c,), jnp.float32, 0.5, 1.5)
    dims = [(32 * 11 * 2, 2 * NB_HIDDEN), (2 * NB_HIDDEN, NB_HIDDEN),
            (NB_HIDDEN, NB_HIDDEN), (NB_HIDDEN, 3)]
    for i, (din, dout) in enumerate(dims):
        p[f"w_fc{i + 1}"] = unif(ks[7 + 2 * i], (dout, din), din)
        p[f"b_fc{i + 1}"] = unif(ks[8 + 2 * i], (dout,), din)
    return p


# ----------------------------------------------------------------------------
# Plain-JAX reference mirroring the PyTorch module (eval mode), for validation
# ----------------------------------------------------------------------------
def reference_forward(p, x_nchw):
    hi = jax.lax.Precision.HIGHEST

    def conv2x2_replicate(x, w, b):                       # x (N,C,H,W); w (Co,Ci,2,2)
        xp = jnp.pad(x, ((0, 0), (0, 0), (1, 1), (1, 1)), mode="edge")
        ho, wo = xp.shape[2] - 1, xp.shape[3] - 1
        out = b[None, :, None, None]
        for dh in range(2):
            for dw in range(2):
                patch = xp[:, :, dh:dh + ho, dw:dw + wo]
                out = out + jnp.einsum("nchw,oc->nohw", patch, w[:, :, dh, dw],
                                       precision=hi)
        return out

    def maxpool2(x):
        n, c, h, w = x.shape
        ho, wo = h // 2, w // 2
        x = x[:, :, :ho * 2, :wo * 2].reshape(n, c, ho, 2, wo, 2)
        return jnp.max(x, axis=(3, 5))

    def bn(x, name):
        s = p[f"{name}_gamma"] / jnp.sqrt(p[f"{name}_var"] + BN_EPS)
        t = p[f"{name}_beta"] - p[f"{name}_mean"] * s
        return x * s[None, :, None, None] + t[None, :, None, None]

    x = x_nchw.astype(jnp.float32)
    x = jax.nn.relu(bn(maxpool2(conv2x2_replicate(x, p["w_conv1"], p["b_conv1"])), "bn1"))
    x = jax.nn.relu(bn(maxpool2(conv2x2_replicate(x, p["w_conv2"], p["b_conv2"])), "bn2"))
    x = jax.nn.relu(bn(conv2x2_replicate(x, p["w_conv3"], p["b_conv3"]), "bn3"))
    x = x.reshape(x.shape[0], 32 * 11 * 2)
    x = jax.nn.relu(jnp.dot(x, p["w_fc1"].T, precision=hi) + p["b_fc1"])
    x = jax.nn.relu(jnp.dot(x, p["w_fc2"].T, precision=hi) + p["b_fc2"])
    x = jax.nn.relu(jnp.dot(x, p["w_fc3"].T, precision=hi) + p["b_fc3"])
    logits = jnp.dot(x, p["w_fc4"].T, precision=hi) + p["b_fc4"]
    return jax.nn.softmax(logits, axis=1)


if __name__ == "__main__":
    key = jax.random.PRNGKey(0)
    k_x, k_p = jax.random.split(key)
    # Input shape implied by the architecture: (N, 1, 39, 2) -> flatten 32*11*2
    x = jax.random.normal(k_x, (2, 1, H_IN, W_IN), jnp.float32)
    params = init_params(k_p)
    prepared = prepare_params(params)

    out = net_forward(prepared, x)
    out = jax.block_until_ready(out)

    ref = reference_forward(params, x)

    assert out.shape == (2, 3), out.shape
    assert bool(jnp.all(jnp.isfinite(out)))
    assert bool(jnp.allclose(jnp.sum(out, axis=1), 1.0, atol=1e-5))
    assert bool(jnp.allclose(out, ref, atol=2e-3)), (out, ref)
    print("KERNEL_OK")
</pallas_src>

<mosaic_0001>
module attributes {stable_mosaic.version = 11 : i64} {
  func.func @_net_kernel(%arg0: i32, %arg1: memref<1x1x39x2xf32, #tpu.memory_space<vmem>>, %arg2: memref<4x16xf32, #tpu.memory_space<vmem>>, %arg3: memref<2x16xf32, #tpu.memory_space<vmem>>, %arg4: memref<16x16xf32, #tpu.memory_space<vmem>>, %arg5: memref<16x16xf32, #tpu.memory_space<vmem>>, %arg6: memref<2x16xf32, #tpu.memory_space<vmem>>, %arg7: memref<16x32xf32, #tpu.memory_space<vmem>>, %arg8: memref<16x32xf32, #tpu.memory_space<vmem>>, %arg9: memref<1x32xf32, #tpu.memory_space<vmem>>, %arg10: memref<352x200xf32, #tpu.memory_space<vmem>>, %arg11: memref<1x200xf32, #tpu.memory_space<vmem>>, %arg12: memref<200x100xf32, #tpu.memory_space<vmem>>, %arg13: memref<1x100xf32, #tpu.memory_space<vmem>>, %arg14: memref<100x100xf32, #tpu.memory_space<vmem>>, %arg15: memref<1x100xf32, #tpu.memory_space<vmem>>, %arg16: memref<100x3xf32, #tpu.memory_space<vmem>>, %arg17: memref<1x3xf32, #tpu.memory_space<vmem>>, %arg18: memref<1x1x3xf32, #tpu.memory_space<vmem>>) attributes {dimension_semantics = [#tpu.dimension_semantics<parallel>], iteration_bounds = array<i64: 2>, scalar_prefetch = 0 : i64, scratch_operands = 0 : i64, tpu.core_type = #tpu.core_type<tc>, window_params = [{transform_indices = @transform_0, window_bounds = array<i64: 1, 1, 39, 2>}, {pipeline_mode = #tpu.pipeline_mode<synchronous>, transform_indices = @transform_1, window_bounds = array<i64: 4, 16>}, {pipeline_mode = #tpu.pipeline_mode<synchronous>, transform_indices = @transform_2, window_bounds = array<i64: 2, 16>}, {pipeline_mode = #tpu.pipeline_mode<synchronous>, transform_indices = @transform_3, window_bounds = array<i64: 16, 16>}, {pipeline_mode = #tpu.pipeline_mode<synchronous>, transform_indices = @transform_4, window_bounds = array<i64: 16, 16>}, {pipeline_mode = #tpu.pipeline_mode<synchronous>, transform_indices = @transform_5, window_bounds = array<i64: 2, 16>}, {pipeline_mode = #tpu.pipeline_mode<synchronous>, transform_indices = @transform_6, window_bounds = array<i64: 16, 32>}, {pipeline_mode = #tpu.pipeline_mode<synchronous>, transform_indices = @transform_7, window_bounds = array<i64: 16, 32>}, {pipeline_mode = #tpu.pipeline_mode<synchronous>, transform_indices = @transform_8, window_bounds = array<i64: 1, 32>}, {pipeline_mode = #tpu.pipeline_mode<synchronous>, transform_indices = @transform_9, window_bounds = array<i64: 352, 200>}, {pipeline_mode = #tpu.pipeline_mode<synchronous>, transform_indices = @transform_10, window_bounds = array<i64: 1, 200>}, {pipeline_mode = #tpu.pipeline_mode<synchronous>, transform_indices = @transform_11, window_bounds = array<i64: 200, 100>}, {pipeline_mode = #tpu.pipeline_mode<synchronous>, transform_indices = @transform_12, window_bounds = array<i64: 1, 100>}, {pipeline_mode = #tpu.pipeline_mode<synchronous>, transform_indices = @transform_13, window_bounds = array<i64: 100, 100>}, {pipeline_mode = #tpu.pipeline_mode<synchronous>, transform_indices = @transform_14, window_bounds = array<i64: 1, 100>}, {pipeline_mode = #tpu.pipeline_mode<synchronous>, transform_indices = @transform_15, window_bounds = array<i64: 100, 3>}, {pipeline_mode = #tpu.pipeline_mode<synchronous>, transform_indices = @transform_16, window_bounds = array<i64: 1, 3>}, {transform_indices = @transform_17, window_bounds = array<i64: 1, 1, 3>}]} {
    %c0 = arith.constant 0 : index
    %c0_0 = arith.constant 0 : index
    %c0_1 = arith.constant 0 : index
    %c0_2 = arith.constant 0 : index
    %0 = vector.load %arg1[%c0, %c0_0, %c0_1, %c0_2] : memref<1x1x39x2xf32, #tpu.memory_space<vmem>>, vector<1x1x39x2xf32>
    %1 = vector.shape_cast %0 : vector<1x1x39x2xf32> to vector<39x2xf32>
    %c0_3 = arith.constant 0 : index
    %c0_4 = arith.constant 0 : index
    %2 = vector.load %arg2[%c0_3, %c0_4] : memref<4x16xf32, #tpu.memory_space<vmem>>, vector<4x16xf32>
    %3 = tpu.iota {dimensions = array<i32: 0>} : vector<40x39xi32>
    %4 = tpu.iota {dimensions = array<i32: 1>} : vector<40x39xi32>
    %c-1_i32 = arith.constant -1 : i32
    %5 = vector.broadcast %c-1_i32 : i32 to vector<40x39xi32>
    %6 = arith.addi %3, %5 : vector<40x39xi32>
    %c0_i32 = arith.constant 0 : i32
    %c38_i32 = arith.constant 38 : i32
    %7 = vector.broadcast %c0_i32 : i32 to vector<40x39xi32>
    %8 = arith.maxsi %7, %6 : vector<40x39xi32>
    %9 = vector.broadcast %c38_i32 : i32 to vector<40x39xi32>
    %10 = arith.minsi %9, %8 : vector<40x39xi32>
    %11 = arith.cmpi eq, %4, %10 : vector<40x39xi32>
    %12 = arith.extui %11 : vector<40x39xi1> to vector<40x39xi32>
    %13 = arith.sitofp %12 : vector<40x39xi32> to vector<40x39xf32>
    %14 = tpu.iota {dimensions = array<i32: 0>} : vector<40x39xi32>
    %15 = tpu.iota {dimensions = array<i32: 1>} : vector<40x39xi32>
    %c0_i32_5 = arith.constant 0 : i32
    %16 = vector.broadcast %c0_i32_5 : i32 to vector<40x39xi32>
    %17 = arith.addi %14, %16 : vector<40x39xi32>
    %c0_i32_6 = arith.constant 0 : i32
    %c38_i32_7 = arith.constant 38 : i32
    %18 = vector.broadcast %c0_i32_6 : i32 to vector<40x39xi32>
    %19 = arith.maxsi %18, %17 : vector<40x39xi32>
    %20 = vector.broadcast %c38_i32_7 : i32 to vector<40x39xi32>
    %21 = arith.minsi %20, %19 : vector<40x39xi32>
    %22 = arith.cmpi eq, %15, %21 : vector<40x39xi32>
    %23 = arith.extui %22 : vector<40x39xi1> to vector<40x39xi32>
    %24 = arith.sitofp %23 : vector<40x39xi32> to vector<40x39xf32>
    %cst = arith.constant dense<0.000000e+00> : vector<40x2xf32>
    %25 = tpu.matmul %13, %1, %cst {dimension_numbers = #tpu.dot_dimension_numbers<[1], [0], [0], [1], [0, 0, 1, 1], [], []>} : vector<40x39xf32>, vector<39x2xf32>, vector<40x2xf32> -> vector<40x2xf32>
    %cst_8 = arith.constant dense<0.000000e+00> : vector<40x2xf32>
    %26 = tpu.matmul %24, %1, %cst_8 {dimension_numbers = #tpu.dot_dimension_numbers<[1], [0], [0], [1], [0, 0, 1, 1], [], []>} : vector<40x39xf32>, vector<39x2xf32>, vector<40x2xf32> -> vector<40x2xf32>
    %27 = vector.extract_strided_slice %2 {offsets = [0, 0], sizes = [1, 16], strides = [1, 1]} : vector<4x16xf32> to vector<1x16xf32>
    %28 = vector.extract_strided_slice %2 {offsets = [1, 0], sizes = [1, 16], strides = [1, 1]} : vector<4x16xf32> to vector<1x16xf32>
    %29 = vector.extract_strided_slice %2 {offsets = [2, 0], sizes = [1, 16], strides = [1, 1]} : vector<4x16xf32> to vector<1x16xf32>
    %30 = vector.extract_strided_slice %2 {offsets = [3, 0], sizes = [1, 16], strides = [1, 1]} : vector<4x16xf32> to vector<1x16xf32>
    %31 = vector.extract_strided_slice %25 {offsets = [0, 0], sizes = [40, 1], strides = [1, 1]} : vector<40x2xf32> to vector<40x1xf32>
    %32 = vector.extract_strided_slice %25 {offsets = [0, 1], sizes = [40, 1], strides = [1, 1]} : vector<40x2xf32> to vector<40x1xf32>
    %33 = vector.extract_strided_slice %26 {offsets = [0, 0], sizes = [40, 1], strides = [1, 1]} : vector<40x2xf32> to vector<40x1xf32>
    %34 = vector.extract_strided_slice %26 {offsets = [0, 1], sizes = [40, 1], strides = [1, 1]} : vector<40x2xf32> to vector<40x1xf32>
    %35 = arith.addf %27, %28 : vector<1x16xf32>
    %36 = vector.broadcast %31 : vector<40x1xf32> to vector<40x16xf32>
    %37 = vector.broadcast %35 : vector<1x16xf32> to vector<40x16xf32>
    %38 = arith.mulf %36, %37 : vector<40x16xf32>
    %39 = arith.addf %29, %30 : vector<1x16xf32>
    %40 = vector.broadcast %33 : vector<40x1xf32> to vector<40x16xf32>
    %41 = vector.broadcast %39 : vector<1x16xf32> to vector<40x16xf32>
    %42 = arith.mulf %40, %41 : vector<40x16xf32>
    %43 = arith.addf %38, %42 : vector<40x16xf32>
    %44 = vector.broadcast %31 : vector<40x1xf32> to vector<40x16xf32>
    %45 = vector.broadcast %27 : vector<1x16xf32> to vector<40x16xf32>
    %46 = arith.mulf %44, %45 : vector<40x16xf32>
    %47 = vector.broadcast %32 : vector<40x1xf32> to vector<40x16xf32>
    %48 = vector.broadcast %28 : vector<1x16xf32> to vector<40x16xf32>
    %49 = arith.mulf %47, %48 : vector<40x16xf32>
    %50 = arith.addf %46, %49 : vector<40x16xf32>
    %51 = vector.broadcast %33 : vector<40x1xf32> to vector<40x16xf32>
    %52 = vector.broadcast %29 : vector<1x16xf32> to vector<40x16xf32>
    %53 = arith.mulf %51, %52 : vector<40x16xf32>
    %54 = arith.addf %50, %53 : vector<40x16xf32>
    %55 = vector.broadcast %34 : vector<40x1xf32> to vector<40x16xf32>
    %56 = vector.broadcast %30 : vector<1x16xf32> to vector<40x16xf32>
    %57 = arith.mulf %55, %56 : vector<40x16xf32>
    %58 = arith.addf %54, %57 : vector<40x16xf32>
    %59 = arith.maximumf %43, %58 : vector<40x16xf32>
    %60 = tpu.iota {dimensions = array<i32: 0>} : vector<20x40xi32>
    %61 = tpu.iota {dimensions = array<i32: 1>} : vector<20x40xi32>
    %c2_i32 = arith.constant 2 : i32
    %62 = vector.broadcast %c2_i32 : i32 to vector<20x40xi32>
    %63 = arith.muli %62, %60 : vector<20x40xi32>
    %c0_i32_9 = arith.constant 0 : i32
    %64 = vector.broadcast %c0_i32_9 : i32 to vector<20x40xi32>
    %65 = arith.addi %63, %64 : vector<20x40xi32>
    %66 = arith.cmpi eq, %61, %65 : vector<20x40xi32>
    %67 = arith.extui %66 : vector<20x40xi1> to vector<20x40xi32>
    %68 = arith.sitofp %67 : vector<20x40xi32> to vector<20x40xf32>
    %69 = tpu.iota {dimensions = array<i32: 0>} : vector<20x40xi32>
    %70 = tpu.iota {dimensions = array<i32: 1>} : vector<20x40xi32>
    %c2_i32_10 = arith.constant 2 : i32
    %71 = vector.broadcast %c2_i32_10 : i32 to vector<20x40xi32>
    %72 = arith.muli %71, %69 : vector<20x40xi32>
    %c1_i32 = arith.constant 1 : i32
    %73 = vector.broadcast %c1_i32 : i32 to vector<20x40xi32>
    %74 = arith.addi %72, %73 : vector<20x40xi32>
    %75 = arith.cmpi eq, %70, %74 : vector<20x40xi32>
    %76 = arith.extui %75 : vector<20x40xi1> to vector<20x40xi32>
    %77 = arith.sitofp %76 : vector<20x40xi32> to vector<20x40xf32>
    %cst_11 = arith.constant dense<0.000000e+00> : vector<20x16xf32>
    %78 = tpu.matmul %68, %59, %cst_11 {dimension_numbers = #tpu.dot_dimension_numbers<[1], [0], [0], [1], [0, 0, 1, 1], [], []>} : vector<20x40xf32>, vector<40x16xf32>, vector<20x16xf32> -> vector<20x16xf32>
    %cst_12 = arith.constant dense<0.000000e+00> : vector<20x16xf32>
    %79 = tpu.matmul %77, %59, %cst_12 {dimension_numbers = #tpu.dot_dimension_numbers<[1], [0], [0], [1], [0, 0, 1, 1], [], []>} : vector<20x40xf32>, vector<40x16xf32>, vector<20x16xf32> -> vector<20x16xf32>
    %80 = arith.maximumf %78, %79 : vector<20x16xf32>
    %c0_13 = arith.constant 0 : index
    %c0_14 = arith.constant 0 : index
    %81 = vector.load %arg3[%c0_13, %c0_14] : memref<2x16xf32, #tpu.memory_space<vmem>>, vector<1x16xf32>
    %82 = vector.broadcast %81 : vector<1x16xf32> to vector<20x16xf32>
    %83 = arith.mulf %80, %82 : vector<20x16xf32>
    %c1 = arith.constant 1 : index
    %c0_15 = arith.constant 0 : index
    %84 = vector.load %arg3[%c1, %c0_15] : memref<2x16xf32, #tpu.memory_space<vmem>>, vector<1x16xf32>
    %85 = vector.broadcast %84 : vector<1x16xf32> to vector<20x16xf32>
    %86 = arith.addf %83, %85 : vector<20x16xf32>
    %cst_16 = arith.constant 0.000000e+00 : f32
    %87 = vector.broadcast %cst_16 : f32 to vector<20x16xf32>
    %88 = arith.maximumf %86, %87 : vector<20x16xf32>
    %89 = tpu.iota {dimensions = array<i32: 0>} : vector<21x20xi32>
    %90 = tpu.iota {dimensions = array<i32: 1>} : vector<21x20xi32>
    %c-1_i32_17 = arith.constant -1 : i32
    %91 = vector.broadcast %c-1_i32_17 : i32 to vector<21x20xi32>
    %92 = arith.addi %89, %91 : vector<21x20xi32>
    %c0_i32_18 = arith.constant 0 : i32
    %c19_i32 = arith.constant 19 : i32
    %93 = vector.broadcast %c0_i32_18 : i32 to vector<21x20xi32>
    %94 = arith.maxsi %93, %92 : vector<21x20xi32>
    %95 = vector.broadcast %c19_i32 : i32 to vector<21x20xi32>
    %96 = arith.minsi %95, %94 : vector<21x20xi32>
    %97 = arith.cmpi eq, %90, %96 : vector<21x20xi32>
    %98 = arith.extui %97 : vector<21x20xi1> to vector<21x20xi32>
    %99 = arith.sitofp %98 : vector<21x20xi32> to vector<21x20xf32>
    %100 = tpu.iota {dimensions = array<i32: 0>} : vector<21x20xi32>
    %101 = tpu.iota {dimensions = array<i32: 1>} : vector<21x20xi32>
    %c0_i32_19 = arith.constant 0 : i32
    %102 = vector.broadcast %c0_i32_19 : i32 to vector<21x20xi32>
    %103 = arith.addi %100, %102 : vector<21x20xi32>
    %c0_i32_20 = arith.constant 0 : i32
    %c19_i32_21 = arith.constant 19 : i32
    %104 = vector.broadcast %c0_i32_20 : i32 to vector<21x20xi32>
    %105 = arith.maxsi %104, %103 : vector<21x20xi32>
    %106 = vector.broadcast %c19_i32_21 : i32 to vector<21x20xi32>
    %107 = arith.minsi %106, %105 : vector<21x20xi32>
    %108 = arith.cmpi eq, %101, %107 : vector<21x20xi32>
    %109 = arith.extui %108 : vector<21x20xi1> to vector<21x20xi32>
    %110 = arith.sitofp %109 : vector<21x20xi32> to vector<21x20xf32>
    %cst_22 = arith.constant dense<0.000000e+00> : vector<21x16xf32>
    %111 = tpu.matmul %99, %88, %cst_22 {dimension_numbers = #tpu.dot_dimension_numbers<[1], [0], [0], [1], [0, 0, 1, 1], [], []>} : vector<21x20xf32>, vector<20x16xf32>, vector<21x16xf32> -> vector<21x16xf32>
    %c0_23 = arith.constant 0 : index
    %c0_24 = arith.constant 0 : index
    %112 = vector.load %arg4[%c0_23, %c0_24] : memref<16x16xf32, #tpu.memory_space<vmem>>, vector<16x16xf32>
    %cst_25 = arith.constant dense<0.000000e+00> : vector<21x16xf32>
    %113 = tpu.matmul %111, %112, %cst_25 {dimension_numbers = #tpu.dot_dimension_numbers<[1], [0], [0], [1], [0, 0, 1, 1], [], []>} : vector<21x16xf32>, vector<16x16xf32>, vector<21x16xf32> -> vector<21x16xf32>
    %cst_26 = arith.constant dense<0.000000e+00> : vector<21x16xf32>
    %114 = tpu.matmul %110, %88, %cst_26 {dimension_numbers = #tpu.dot_dimension_numbers<[1], [0], [0], [1], [0, 0, 1, 1], [], []>} : vector<21x20xf32>, vector<20x16xf32>, vector<21x16xf32> -> vector<21x16xf32>
    %c0_27 = arith.constant 0 : index
    %c0_28 = arith.constant 0 : index
    %115 = vector.load %arg5[%c0_27, %c0_28] : memref<16x16xf32, #tpu.memory_space<vmem>>, vector<16x16xf32>
    %cst_29 = arith.constant dense<0.000000e+00> : vector<21x16xf32>
    %116 = tpu.matmul %114, %115, %cst_29 {dimension_numbers = #tpu.dot_dimension_numbers<[1], [0], [0], [1], [0, 0, 1, 1], [], []>} : vector<21x16xf32>, vector<16x16xf32>, vector<21x16xf32> -> vector<21x16xf32>
    %117 = arith.addf %113, %116 : vector<21x16xf32>
    %118 = tpu.iota {dimensions = array<i32: 0>} : vector<10x21xi32>
    %119 = tpu.iota {dimensions = array<i32: 1>} : vector<10x21xi32>
    %c2_i32_30 = arith.constant 2 : i32
    %120 = vector.broadcast %c2_i32_30 : i32 to vector<10x21xi32>
    %121 = arith.muli %120, %118 : vector<10x21xi32>
    %c0_i32_31 = arith.constant 0 : i32
    %122 = vector.broadcast %c0_i32_31 : i32 to vector<10x21xi32>
    %123 = arith.addi %121, %122 : vector<10x21xi32>
    %124 = arith.cmpi eq, %119, %123 : vector<10x21xi32>
    %125 = arith.extui %124 : vector<10x21xi1> to vector<10x21xi32>
    %126 = arith.sitofp %125 : vector<10x21xi32> to vector<10x21xf32>
    %127 = tpu.iota {dimensions = array<i32: 0>} : vector<10x21xi32>
    %128 = tpu.iota {dimensions = array<i32: 1>} : vector<10x21xi32>
    %c2_i32_32 = arith.constant 2 : i32
    %129 = vector.broadcast %c2_i32_32 : i32 to vector<10x21xi32>
    %130 = arith.muli %129, %127 : vector<10x21xi32>
    %c1_i32_33 = arith.constant 1 : i32
    %131 = vector.broadcast %c1_i32_33 : i32 to vector<10x21xi32>
    %132 = arith.addi %130, %131 : vector<10x21xi32>
    %133 = arith.cmpi eq, %128, %132 : vector<10x21xi32>
    %134 = arith.extui %133 : vector<10x21xi1> to vector<10x21xi32>
    %135 = arith.sitofp %134 : vector<10x21xi32> to vector<10x21xf32>
    %cst_34 = arith.constant dense<0.000000e+00> : vector<10x16xf32>
    %136 = tpu.matmul %126, %117, %cst_34 {dimension_numbers = #tpu.dot_dimension_numbers<[1], [0], [0], [1], [0, 0, 1, 1], [], []>} : vector<10x21xf32>, vector<21x16xf32>, vector<10x16xf32> -> vector<10x16xf32>
    %cst_35 = arith.constant dense<0.000000e+00> : vector<10x16xf32>
    %137 = tpu.matmul %135, %117, %cst_35 {dimension_numbers = #tpu.dot_dimension_numbers<[1], [0], [0], [1], [0, 0, 1, 1], [], []>} : vector<10x21xf32>, vector<21x16xf32>, vector<10x16xf32> -> vector<10x16xf32>
    %138 = arith.maximumf %136, %137 : vector<10x16xf32>
    %c0_36 = arith.constant 0 : index
    %c0_37 = arith.constant 0 : index
    %139 = vector.load %arg6[%c0_36, %c0_37] : memref<2x16xf32, #tpu.memory_space<vmem>>, vector<1x16xf32>
    %140 = vector.broadcast %139 : vector<1x16xf32> to vector<10x16xf32>
    %141 = arith.mulf %138, %140 : vector<10x16xf32>
    %c1_38 = arith.constant 1 : index
    %c0_39 = arith.constant 0 : index
    %142 = vector.load %arg6[%c1_38, %c0_39] : memref<2x16xf32, #tpu.memory_space<vmem>>, vector<1x16xf32>
    %143 = vector.broadcast %142 : vector<1x16xf32> to vector<10x16xf32>
    %144 = arith.addf %141, %143 : vector<10x16xf32>
    %cst_40 = arith.constant 0.000000e+00 : f32
    %145 = vector.broadcast %cst_40 : f32 to vector<10x16xf32>
    %146 = arith.maximumf %144, %145 : vector<10x16xf32>
    %147 = tpu.iota {dimensions = array<i32: 0>} : vector<11x10xi32>
    %148 = tpu.iota {dimensions = array<i32: 1>} : vector<11x10xi32>
    %c-1_i32_41 = arith.constant -1 : i32
    %149 = vector.broadcast %c-1_i32_41 : i32 to vector<11x10xi32>
    %150 = arith.addi %147, %149 : vector<11x10xi32>
    %c0_i32_42 = arith.constant 0 : i32
    %c9_i32 = arith.constant 9 : i32
    %151 = vector.broadcast %c0_i32_42 : i32 to vector<11x10xi32>
    %152 = arith.maxsi %151, %150 : vector<11x10xi32>
    %153 = vector.broadcast %c9_i32 : i32 to vector<11x10xi32>
    %154 = arith.minsi %153, %152 : vector<11x10xi32>
    %155 = arith.cmpi eq, %148, %154 : vector<11x10xi32>
    %156 = arith.extui %155 : vector<11x10xi1> to vector<11x10xi32>
    %157 = arith.sitofp %156 : vector<11x10xi32> to vector<11x10xf32>
    %158 = tpu.iota {dimensions = array<i32: 0>} : vector<11x10xi32>
    %159 = tpu.iota {dimensions = array<i32: 1>} : vector<11x10xi32>
    %c0_i32_43 = arith.constant 0 : i32
    %160 = vector.broadcast %c0_i32_43 : i32 to vector<11x10xi32>
    %161 = arith.addi %158, %160 : vector<11x10xi32>
    %c0_i32_44 = arith.constant 0 : i32
    %c9_i32_45 = arith.constant 9 : i32
    %162 = vector.broadcast %c0_i32_44 : i32 to vector<11x10xi32>
    %163 = arith.maxsi %162, %161 : vector<11x10xi32>
    %164 = vector.broadcast %c9_i32_45 : i32 to vector<11x10xi32>
    %165 = arith.minsi %164, %163 : vector<11x10xi32>
    %166 = arith.cmpi eq, %159, %165 : vector<11x10xi32>
    %167 = arith.extui %166 : vector<11x10xi1> to vector<11x10xi32>
    %168 = arith.sitofp %167 : vector<11x10xi32> to vector<11x10xf32>
    %cst_46 = arith.constant dense<0.000000e+00> : vector<11x16xf32>
    %169 = tpu.matmul %157, %146, %cst_46 {dimension_numbers = #tpu.dot_dimension_numbers<[1], [0], [0], [1], [0, 0, 1, 1], [], []>} : vector<11x10xf32>, vector<10x16xf32>, vector<11x16xf32> -> vector<11x16xf32>
    %c0_47 = arith.constant 0 : index
    %c0_48 = arith.constant 0 : index
    %170 = vector.load %arg7[%c0_47, %c0_48] : memref<16x32xf32, #tpu.memory_space<vmem>>, vector<16x32xf32>
    %cst_49 = arith.constant dense<0.000000e+00> : vector<11x32xf32>
    %171 = tpu.matmul %169, %170, %cst_49 {dimension_numbers = #tpu.dot_dimension_numbers<[1], [0], [0], [1], [0, 0, 1, 1], [], []>} : vector<11x16xf32>, vector<16x32xf32>, vector<11x32xf32> -> vector<11x32xf32>
    %cst_50 = arith.constant dense<0.000000e+00> : vector<11x16xf32>
    %172 = tpu.matmul %168, %146, %cst_50 {dimension_numbers = #tpu.dot_dimension_numbers<[1], [0], [0], [1], [0, 0, 1, 1], [], []>} : vector<11x10xf32>, vector<10x16xf32>, vector<11x16xf32> -> vector<11x16xf32>
    %c0_51 = arith.constant 0 : index
    %c0_52 = arith.constant 0 : index
    %173 = vector.load %arg8[%c0_51, %c0_52] : memref<16x32xf32, #tpu.memory_space<vmem>>, vector<16x32xf32>
    %cst_53 = arith.constant dense<0.000000e+00> : vector<11x32xf32>
    %174 = tpu.matmul %172, %173, %cst_53 {dimension_numbers = #tpu.dot_dimension_numbers<[1], [0], [0], [1], [0, 0, 1, 1], [], []>} : vector<11x16xf32>, vector<16x32xf32>, vector<11x32xf32> -> vector<11x32xf32>
    %175 = arith.addf %171, %174 : vector<11x32xf32>
    %c0_54 = arith.constant 0 : index
    %c0_55 = arith.constant 0 : index
    %176 = vector.load %arg9[%c0_54, %c0_55] : memref<1x32xf32, #tpu.memory_space<vmem>>, vector<1x32xf32>
    %177 = vector.broadcast %176 : vector<1x32xf32> to vector<11x32xf32>
    %178 = arith.addf %175, %177 : vector<11x32xf32>
    %cst_56 = arith.constant 0.000000e+00 : f32
    %179 = vector.broadcast %cst_56 : f32 to vector<11x32xf32>
    %180 = arith.maximumf %178, %179 : vector<11x32xf32>
    %c0_57 = arith.constant 0 : index
    %c0_58 = arith.constant 0 : index
    %181 = vector.load %arg11[%c0_57, %c0_58] : memref<1x200xf32, #tpu.memory_space<vmem>>, vector<1x200xf32>
    %182 = vector.extract_strided_slice %180 {offsets = [0, 0], sizes = [1, 32], strides = [1, 1]} : vector<11x32xf32> to vector<1x32xf32>
    %c0_59 = arith.constant 0 : index
    %c0_60 = arith.constant 0 : index
    %183 = vector.load %arg10[%c0_59, %c0_60] : memref<352x200xf32, #tpu.memory_space<vmem>>, vector<32x200xf32>
    %cst_61 = arith.constant dense<0.000000e+00> : vector<1x200xf32>
    %184 = tpu.matmul %182, %183, %cst_61 {dimension_numbers = #tpu.dot_dimension_numbers<[1], [0], [0], [1], [0, 0, 1, 1], [], []>} : vector<1x32xf32>, vector<32x200xf32>, vector<1x200xf32> -> vector<1x200xf32>
    %185 = arith.addf %181, %184 : vector<1x200xf32>
    %186 = vector.extract_strided_slice %180 {offsets = [1, 0], sizes = [1, 32], strides = [1, 1]} : vector<11x32xf32> to vector<1x32xf32>
    %c32 = arith.constant 32 : index
    %c0_62 = arith.constant 0 : index
    %187 = vector.load %arg10[%c32, %c0_62] : memref<352x200xf32, #tpu.memory_space<vmem>>, vector<32x200xf32>
    %cst_63 = arith.constant dense<0.000000e+00> : vector<1x200xf32>
    %188 = tpu.matmul %186, %187, %cst_63 {dimension_numbers = #tpu.dot_dimension_numbers<[1], [0], [0], [1], [0, 0, 1, 1], [], []>} : vector<1x32xf32>, vector<32x200xf32>, vector<1x200xf32> -> vector<1x200xf32>
    %189 = arith.addf %185, %188 : vector<1x200xf32>
    %190 = vector.extract_strided_slice %180 {offsets = [2, 0], sizes = [1, 32], strides = [1, 1]} : vector<11x32xf32> to vector<1x32xf32>
    %c64 = arith.constant 64 : index
    %c0_64 = arith.constant 0 : index
    %191 = vector.load %arg10[%c64, %c0_64] : memref<352x200xf32, #tpu.memory_space<vmem>>, vector<32x200xf32>
    %cst_65 = arith.constant dense<0.000000e+00> : vector<1x200xf32>
    %192 = tpu.matmul %190, %191, %cst_65 {dimension_numbers = #tpu.dot_dimension_numbers<[1], [0], [0], [1], [0, 0, 1, 1], [], []>} : vector<1x32xf32>, vector<32x200xf32>, vector<1x200xf32> -> vector<1x200xf32>
    %193 = arith.addf %189, %192 : vector<1x200xf32>
    %194 = vector.extract_strided_slice %180 {offsets = [3, 0], sizes = [1, 32], strides = [1, 1]} : vector<11x32xf32> to vector<1x32xf32>
    %c96 = arith.constant 96 : index
    %c0_66 = arith.constant 0 : index
    %195 = vector.load %arg10[%c96, %c0_66] : memref<352x200xf32, #tpu.memory_space<vmem>>, vector<32x200xf32>
    %cst_67 = arith.constant dense<0.000000e+00> : vector<1x200xf32>
    %196 = tpu.matmul %194, %195, %cst_67 {dimension_numbers = #tpu.dot_dimension_numbers<[1], [0], [0], [1], [0, 0, 1, 1], [], []>} : vector<1x32xf32>, vector<32x200xf32>, vector<1x200xf32> -> vector<1x200xf32>
    %197 = arith.addf %193, %196 : vector<1x200xf32>
    %198 = vector.extract_strided_slice %180 {offsets = [4, 0], sizes = [1, 32], strides = [1, 1]} : vector<11x32xf32> to vector<1x32xf32>
    %c128 = arith.constant 128 : index
    %c0_68 = arith.constant 0 : index
    %199 = vector.load %arg10[%c128, %c0_68] : memref<352x200xf32, #tpu.memory_space<vmem>>, vector<32x200xf32>
    %cst_69 = arith.constant dense<0.000000e+00> : vector<1x200xf32>
    %200 = tpu.matmul %198, %199, %cst_69 {dimension_numbers = #tpu.dot_dimension_numbers<[1], [0], [0], [1], [0, 0, 1, 1], [], []>} : vector<1x32xf32>, vector<32x200xf32>, vector<1x200xf32> -> vector<1x200xf32>
    %201 = arith.addf %197, %200 : vector<1x200xf32>
    %202 = vector.extract_strided_slice %180 {offsets = [5, 0], sizes = [1, 32], strides = [1, 1]} : vector<11x32xf32> to vector<1x32xf32>
    %c160 = arith.constant 160 : index
    %c0_70 = arith.constant 0 : index
    %203 = vector.load %arg10[%c160, %c0_70] : memref<352x200xf32, #tpu.memory_space<vmem>>, vector<32x200xf32>
    %cst_71 = arith.constant dense<0.000000e+00> : vector<1x200xf32>
    %204 = tpu.matmul %202, %203, %cst_71 {dimension_numbers = #tpu.dot_dimension_numbers<[1], [0], [0], [1], [0, 0, 1, 1], [], []>} : vector<1x32xf32>, vector<32x200xf32>, vector<1x200xf32> -> vector<1x200xf32>
    %205 = arith.addf %201, %204 : vector<1x200xf32>
    %206 = vector.extract_strided_slice %180 {offsets = [6, 0], sizes = [1, 32], strides = [1, 1]} : vector<11x32xf32> to vector<1x32xf32>
    %c192 = arith.constant 192 : index
    %c0_72 = arith.constant 0 : index
    %207 = vector.load %arg10[%c192, %c0_72] : memref<352x200xf32, #tpu.memory_space<vmem>>, vector<32x200xf32>
    %cst_73 = arith.constant dense<0.000000e+00> : vector<1x200xf32>
    %208 = tpu.matmul %206, %207, %cst_73 {dimension_numbers = #tpu.dot_dimension_numbers<[1], [0], [0], [1], [0, 0, 1, 1], [], []>} : vector<1x32xf32>, vector<32x200xf32>, vector<1x200xf32> -> vector<1x200xf32>
    %209 = arith.addf %205, %208 : vector<1x200xf32>
    %210 = vector.extract_strided_slice %180 {offsets = [7, 0], sizes = [1, 32], strides = [1, 1]} : vector<11x32xf32> to vector<1x32xf32>
    %c224 = arith.constant 224 : index
    %c0_74 = arith.constant 0 : index
    %211 = vector.load %arg10[%c224, %c0_74] : memref<352x200xf32, #tpu.memory_space<vmem>>, vector<32x200xf32>
    %cst_75 = arith.constant dense<0.000000e+00> : vector<1x200xf32>
    %212 = tpu.matmul %210, %211, %cst_75 {dimension_numbers = #tpu.dot_dimension_numbers<[1], [0], [0], [1], [0, 0, 1, 1], [], []>} : vector<1x32xf32>, vector<32x200xf32>, vector<1x200xf32> -> vector<1x200xf32>
    %213 = arith.addf %209, %212 : vector<1x200xf32>
    %214 = vector.extract_strided_slice %180 {offsets = [8, 0], sizes = [1, 32], strides = [1, 1]} : vector<11x32xf32> to vector<1x32xf32>
    %c256 = arith.constant 256 : index
    %c0_76 = arith.constant 0 : index
    %215 = vector.load %arg10[%c256, %c0_76] : memref<352x200xf32, #tpu.memory_space<vmem>>, vector<32x200xf32>
    %cst_77 = arith.constant dense<0.000000e+00> : vector<1x200xf32>
    %216 = tpu.matmul %214, %215, %cst_77 {dimension_numbers = #tpu.dot_dimension_numbers<[1], [0], [0], [1], [0, 0, 1, 1], [], []>} : vector<1x32xf32>, vector<32x200xf32>, vector<1x200xf32> -> vector<1x200xf32>
    %217 = arith.addf %213, %216 : vector<1x200xf32>
    %218 = vector.extract_strided_slice %180 {offsets = [9, 0], sizes = [1, 32], strides = [1, 1]} : vector<11x32xf32> to vector<1x32xf32>
    %c288 = arith.constant 288 : index
    %c0_78 = arith.constant 0 : index
    %219 = vector.load %arg10[%c288, %c0_78] : memref<352x200xf32, #tpu.memory_space<vmem>>, vector<32x200xf32>
    %cst_79 = arith.constant dense<0.000000e+00> : vector<1x200xf32>
    %220 = tpu.matmul %218, %219, %cst_79 {dimension_numbers = #tpu.dot_dimension_numbers<[1], [0], [0], [1], [0, 0, 1, 1], [], []>} : vector<1x32xf32>, vector<32x200xf32>, vector<1x200xf32> -> vector<1x200xf32>
    %221 = arith.addf %217, %220 : vector<1x200xf32>
    %222 = vector.extract_strided_slice %180 {offsets = [10, 0], sizes = [1, 32], strides = [1, 1]} : vector<11x32xf32> to vector<1x32xf32>
    %c320 = arith.constant 320 : index
    %c0_80 = arith.constant 0 : index
    %223 = vector.load %arg10[%c320, %c0_80] : memref<352x200xf32, #tpu.memory_space<vmem>>, vector<32x200xf32>
    %cst_81 = arith.constant dense<0.000000e+00> : vector<1x200xf32>
    %224 = tpu.matmul %222, %223, %cst_81 {dimension_numbers = #tpu.dot_dimension_numbers<[1], [0], [0], [1], [0, 0, 1, 1], [], []>} : vector<1x32xf32>, vector<32x200xf32>, vector<1x200xf32> -> vector<1x200xf32>
    %225 = arith.addf %221, %224 : vector<1x200xf32>
    %cst_82 = arith.constant 0.000000e+00 : f32
    %226 = vector.broadcast %cst_82 : f32 to vector<1x200xf32>
    %227 = arith.maximumf %225, %226 : vector<1x200xf32>
    %c0_83 = arith.constant 0 : index
    %c0_84 = arith.constant 0 : index
    %228 = vector.load %arg12[%c0_83, %c0_84] : memref<200x100xf32, #tpu.memory_space<vmem>>, vector<200x100xf32>
    %cst_85 = arith.constant dense<0.000000e+00> : vector<1x100xf32>
    %229 = tpu.matmul %227, %228, %cst_85 {dimension_numbers = #tpu.dot_dimension_numbers<[1], [0], [0], [1], [0, 0, 1, 1], [], []>} : vector<1x200xf32>, vector<200x100xf32>, vector<1x100xf32> -> vector<1x100xf32>
    %c0_86 = arith.constant 0 : index
    %c0_87 = arith.constant 0 : index
    %230 = vector.load %arg13[%c0_86, %c0_87] : memref<1x100xf32, #tpu.memory_space<vmem>>, vector<1x100xf32>
    %231 = arith.addf %229, %230 : vector<1x100xf32>
    %cst_88 = arith.constant 0.000000e+00 : f32
    %232 = vector.broadcast %cst_88 : f32 to vector<1x100xf32>
    %233 = arith.maximumf %231, %232 : vector<1x100xf32>
    %c0_89 = arith.constant 0 : index
    %c0_90 = arith.constant 0 : index
    %234 = vector.load %arg14[%c0_89, %c0_90] : memref<100x100xf32, #tpu.memory_space<vmem>>, vector<100x100xf32>
    %cst_91 = arith.constant dense<0.000000e+00> : vector<1x100xf32>
    %235 = tpu.matmul %233, %234, %cst_91 {dimension_numbers = #tpu.dot_dimension_numbers<[1], [0], [0], [1], [0, 0, 1, 1], [], []>} : vector<1x100xf32>, vector<100x100xf32>, vector<1x100xf32> -> vector<1x100xf32>
    %c0_92 = arith.constant 0 : index
    %c0_93 = arith.constant 0 : index
    %236 = vector.load %arg15[%c0_92, %c0_93] : memref<1x100xf32, #tpu.memory_space<vmem>>, vector<1x100xf32>
    %237 = arith.addf %235, %236 : vector<1x100xf32>
    %cst_94 = arith.constant 0.000000e+00 : f32
    %238 = vector.broadcast %cst_94 : f32 to vector<1x100xf32>
    %239 = arith.maximumf %237, %238 : vector<1x100xf32>
    %c0_95 = arith.constant 0 : index
    %c0_96 = arith.constant 0 : index
    %240 = vector.load %arg16[%c0_95, %c0_96] : memref<100x3xf32, #tpu.memory_space<vmem>>, vector<100x3xf32>
    %cst_97 = arith.constant dense<0.000000e+00> : vector<1x3xf32>
    %241 = tpu.matmul %239, %240, %cst_97 {dimension_numbers = #tpu.dot_dimension_numbers<[1], [0], [0], [1], [0, 0, 1, 1], [], []>} : vector<1x100xf32>, vector<100x3xf32>, vector<1x3xf32> -> vector<1x3xf32>
    %c0_98 = arith.constant 0 : index
    %c0_99 = arith.constant 0 : index
    %242 = vector.load %arg17[%c0_98, %c0_99] : memref<1x3xf32, #tpu.memory_space<vmem>>, vector<1x3xf32>
    %243 = arith.addf %241, %242 : vector<1x3xf32>
    %cst_100 = arith.constant dense<0xFF800000> : vector<1xf32>
    %244 = vector.multi_reduction <maximumf>, %243, %cst_100 [1] : vector<1x3xf32> to vector<1xf32>
    %245 = vector.shape_cast %244 : vector<1xf32> to vector<1x1xf32>
    %246 = vector.broadcast %245 : vector<1x1xf32> to vector<1x3xf32>
    %247 = arith.subf %243, %246 : vector<1x3xf32>
    %248 = math.exp %247 : vector<1x3xf32>
    %cst_101 = arith.constant dense<0.000000e+00> : vector<1xf32>
    %249 = vector.multi_reduction <add>, %248, %cst_101 [1] : vector<1x3xf32> to vector<1xf32>
    %250 = vector.shape_cast %249 : vector<1xf32> to vector<1x1xf32>
    %251 = vector.broadcast %250 : vector<1x1xf32> to vector<1x3xf32>
    %252 = arith.divf %248, %251 : vector<1x3xf32>
    %c0_102 = arith.constant 0 : index
    %c0_103 = arith.constant 0 : index
    %c0_104 = arith.constant 0 : index
    %253 = vector.load %arg18[%c0_102, %c0_103, %c0_104] : memref<1x1x3xf32, #tpu.memory_space<vmem>>, vector<1x1x3xf32>
    %254 = vector.shape_cast %253 : vector<1x1x3xf32> to vector<1x3xf32>
    %255 = vector.shape_cast %252 : vector<1x3xf32> to vector<1x1x3xf32>
    tpu.vector_store %arg18[%c0_102, %c0_103, %c0_104], %255 {strides = array<i32>} : memref<1x1x3xf32, #tpu.memory_space<vmem>>, vector<1x1x3xf32>,
    return
  }
  func.func @transform_0(%arg0: i32) -> (i32, i32, i32, i32) {
    %c0_i32 = arith.constant 0 : i32
    %c0_i32_0 = arith.constant 0 : i32
    %c0_i32_1 = arith.constant 0 : i32
    %c0_i32_2 = arith.constant 0 : i32
    return %arg0, %c0_i32, %c0_i32_0, %c0_i32_1 : i32, i32, i32, i32
  }
  func.func @transform_1(%arg0: i32) -> (i32, i32) {
    %c0_i32 = arith.constant 0 : i32
    %c0_i32_0 = arith.constant 0 : i32
    %c0_i32_1 = arith.constant 0 : i32
    return %c0_i32, %c0_i32_0 : i32, i32
  }
  func.func @transform_2(%arg0: i32) -> (i32, i32) {
    %c0_i32 = arith.constant 0 : i32
    %c0_i32_0 = arith.constant 0 : i32
    %c0_i32_1 = arith.constant 0 : i32
    return %c0_i32, %c0_i32_0 : i32, i32
  }
  func.func @transform_3(%arg0: i32) -> (i32, i32) {
    %c0_i32 = arith.constant 0 : i32
    %c0_i32_0 = arith.constant 0 : i32
    %c0_i32_1 = arith.constant 0 : i32
    return %c0_i32, %c0_i32_0 : i32, i32
  }
  func.func @transform_4(%arg0: i32) -> (i32, i32) {
    %c0_i32 = arith.constant 0 : i32
    %c0_i32_0 = arith.constant 0 : i32
    %c0_i32_1 = arith.constant 0 : i32
    return %c0_i32, %c0_i32_0 : i32, i32
  }
  func.func @transform_5(%arg0: i32) -> (i32, i32) {
    %c0_i32 = arith.constant 0 : i32
    %c0_i32_0 = arith.constant 0 : i32
    %c0_i32_1 = arith.constant 0 : i32
    return %c0_i32, %c0_i32_0 : i32, i32
  }
  func.func @transform_6(%arg0: i32) -> (i32, i32) {
    %c0_i32 = arith.constant 0 : i32
    %c0_i32_0 = arith.constant 0 : i32
    %c0_i32_1 = arith.constant 0 : i32
    return %c0_i32, %c0_i32_0 : i32, i32
  }
  func.func @transform_7(%arg0: i32) -> (i32, i32) {
    %c0_i32 = arith.constant 0 : i32
    %c0_i32_0 = arith.constant 0 : i32
    %c0_i32_1 = arith.constant 0 : i32
    return %c0_i32, %c0_i32_0 : i32, i32
  }
  func.func @transform_8(%arg0: i32) -> (i32, i32) {
    %c0_i32 = arith.constant 0 : i32
    %c0_i32_0 = arith.constant 0 : i32
    %c0_i32_1 = arith.constant 0 : i32
    return %c0_i32, %c0_i32_0 : i32, i32
  }
  func.func @transform_9(%arg0: i32) -> (i32, i32) {
    %c0_i32 = arith.constant 0 : i32
    %c0_i32_0 = arith.constant 0 : i32
    %c0_i32_1 = arith.constant 0 : i32
    return %c0_i32, %c0_i32_0 : i32, i32
  }
  func.func @transform_10(%arg0: i32) -> (i32, i32) {
    %c0_i32 = arith.constant 0 : i32
    %c0_i32_0 = arith.constant 0 : i32
    %c0_i32_1 = arith.constant 0 : i32
    return %c0_i32, %c0_i32_0 : i32, i32
  }
  func.func @transform_11(%arg0: i32) -> (i32, i32) {
    %c0_i32 = arith.constant 0 : i32
    %c0_i32_0 = arith.constant 0 : i32
    %c0_i32_1 = arith.constant 0 : i32
    return %c0_i32, %c0_i32_0 : i32, i32
  }
  func.func @transform_12(%arg0: i32) -> (i32, i32) {
    %c0_i32 = arith.constant 0 : i32
    %c0_i32_0 = arith.constant 0 : i32
    %c0_i32_1 = arith.constant 0 : i32
    return %c0_i32, %c0_i32_0 : i32, i32
  }
  func.func @transform_13(%arg0: i32) -> (i32, i32) {
    %c0_i32 = arith.constant 0 : i32
    %c0_i32_0 = arith.constant 0 : i32
    %c0_i32_1 = arith.constant 0 : i32
    return %c0_i32, %c0_i32_0 : i32, i32
  }
  func.func @transform_14(%arg0: i32) -> (i32, i32) {
    %c0_i32 = arith.constant 0 : i32
    %c0_i32_0 = arith.constant 0 : i32
    %c0_i32_1 = arith.constant 0 : i32
    return %c0_i32, %c0_i32_0 : i32, i32
  }
  func.func @transform_15(%arg0: i32) -> (i32, i32) {
    %c0_i32 = arith.constant 0 : i32
    %c0_i32_0 = arith.constant 0 : i32
    %c0_i32_1 = arith.constant 0 : i32
    return %c0_i32, %c0_i32_0 : i32, i32
  }
  func.func @transform_16(%arg0: i32) -> (i32, i32) {
    %c0_i32 = arith.constant 0 : i32
    %c0_i32_0 = arith.constant 0 : i32
    %c0_i32_1 = arith.constant 0 : i32
    return %c0_i32, %c0_i32_0 : i32, i32
  }
  func.func @transform_17(%arg0: i32) -> (i32, i32, i32) {
    %c0_i32 = arith.constant 0 : i32
    %c0_i32_0 = arith.constant 0 : i32
    %c0_i32_1 = arith.constant 0 : i32
    return %arg0, %c0_i32, %c0_i32_0 : i32, i32, i32
  }
}

</mosaic_0001>

<llo_original>
// kernel: net_forward.1
$region0: #{net_forward.1}
  #allocation0 [shape = 'u32[]', space=smem, size = 0x4, offset = 0x4, fixed_abs, tag = 'smem constant byte address 0x4 - core index']
  #allocation1 [shape = 'u32[72,128]{1,0:T(1,128)}', space=vmem, size = 0x9000, scoped, tag = 'internal scratch']
  %s0 = inlined_call_operand.vmem [shape: f32[2,1,39,2], index: 0, kind: input, shape index: {}]
  %s1 = inlined_call_operand.vmem [shape: f32[4,16], index: 1, kind: input, shape index: {}]
  %s2 = inlined_call_operand.vmem [shape: f32[2,16], index: 2, kind: input, shape index: {}]
  %s3 = inlined_call_operand.vmem [shape: f32[16,16], index: 3, kind: input, shape index: {}]
  %s4 = inlined_call_operand.vmem [shape: f32[16,16], index: 4, kind: input, shape index: {}]
  %s5 = inlined_call_operand.vmem [shape: f32[2,16], index: 5, kind: input, shape index: {}]
  %s6 = inlined_call_operand.vmem [shape: f32[16,32], index: 6, kind: input, shape index: {}]
  %s7 = inlined_call_operand.vmem [shape: f32[16,32], index: 7, kind: input, shape index: {}]
  %s8 = inlined_call_operand.vmem [shape: f32[1,32], index: 8, kind: input, shape index: {}]
  %s9 = inlined_call_operand.vmem [shape: f32[352,200], index: 9, kind: input, shape index: {}]
  %s10 = inlined_call_operand.vmem [shape: f32[1,200], index: 10, kind: input, shape index: {}]
  %s11 = inlined_call_operand.vmem [shape: f32[200,100], index: 11, kind: input, shape index: {}]
  %s12 = inlined_call_operand.vmem [shape: f32[1,100], index: 12, kind: input, shape index: {}]
  %s13 = inlined_call_operand.vmem [shape: f32[100,100], index: 13, kind: input, shape index: {}]
  %s14 = inlined_call_operand.vmem [shape: f32[1,100], index: 14, kind: input, shape index: {}]
  %s15 = inlined_call_operand.vmem [shape: f32[100,3], index: 15, kind: input, shape index: {}]
  %s16 = inlined_call_operand.vmem [shape: f32[1,3], index: 16, kind: input, shape index: {}]
  %s17 = inlined_call_operand.hbm [shape: f32[2,1,3], index: 17, kind: output, shape index: {}]
  %s18 = sld [smem:[#allocation0]]
  $region101: #{net_forward.1} parent=0
    _
  %s20 = ssub.s32 1, %s18
  %s21 = scalar_select 0, %s20, %s18
  $region1: #{net_forward.1} parent=0
    #allocation2 [shape = 'u8[1024]{0}', space=vmem, size = 0x400, scoped, tag = 'output window, operand 0']
    #allocation3 [shape = 's32[2]{0}', space=sflag, size = 0x8, scoped, tag = 'scoped memory for net_forward.1']
    %22 = vsyncpa [#allocation3], 0
    %s23 = scalar_lea.sflag [#allocation3], 1
    %24 = vsyncpa %s23, 0
    loop: start=0, step=1, limit=4
    $region2: #{net_forward.1} parent=1 // loop_pre_header
      _
    $region3: #{net_forward.1} parent=1 // loop_header
      %s26 = sphi 0, %s30
      %p27 = scmp.ge.s32.totalorder %s26, 4
      %s36 = sphi 0, %s38
      %s39 = sphi 0, %s36
      %s40 = sphi 0, %s39
      %s56 = sphi 0, %s40
      %s60 = sphi 0, %s60
      %s62 = sphi 0, %s60
      %s63 = sphi 0, %s62
      %s77 = sphi 0, %s63
      %s81 = sphi 0, %s81
      %s83 = sphi 0, %s81
      %s84 = sphi 0, %s83
      %s98 = sphi 0, %s84
      %s102 = sphi 0, %s102
      %s104 = sphi 0, %s102
      %s105 = sphi 0, %s104
      %s119 = sphi 0, %s105
      %s123 = sphi 0, %s123
      %s125 = sphi 0, %s123
      %s126 = sphi 0, %s125
      %s140 = sphi 0, %s126
      %s144 = sphi 0, %s144
      %s146 = sphi 0, %s144
      %s147 = sphi 0, %s146
      %s161 = sphi 0, %s147
      %s165 = sphi 0, %s165
      %s167 = sphi 0, %s165
      %s168 = sphi 0, %s167
      %s182 = sphi 0, %s168
      %s186 = sphi 0, %s186
      %s188 = sphi 0, %s186
      %s189 = sphi 0, %s188
      %s203 = sphi 0, %s189
      %s207 = sphi 0, %s207
      %s209 = sphi 0, %s207
      %s210 = sphi 0, %s209
      %s224 = sphi 0, %s210
      %s228 = sphi 0, %s228
      %s230 = sphi 0, %s228
      %s231 = sphi 0, %s230
      %s245 = sphi 0, %s231
      %s249 = sphi 0, %s249
      %s251 = sphi 0, %s249
      %s252 = sphi 0, %s251
      %s266 = sphi 0, %s252
      %s270 = sphi 0, %s270
      %s272 = sphi 0, %s270
      %s273 = sphi 0, %s272
      %s287 = sphi 0, %s273
      %s291 = sphi 0, %s291
      %s293 = sphi 0, %s291
      %s294 = sphi 0, %s293
      %s308 = sphi 0, %s294
      %s312 = sphi 0, %s312
      %s314 = sphi 0, %s312
      %s315 = sphi 0, %s314
      %s329 = sphi 0, %s315
      %s333 = sphi 0, %s333
      %s335 = sphi 0, %s333
      %s336 = sphi 0, %s335
      %s350 = sphi 0, %s336
      %s354 = sphi 0, %s354
      %s356 = sphi 0, %s354
      %s357 = sphi 0, %s356
      %s371 = sphi 0, %s357
      %s375 = sphi 0, %s375
      %s377 = sphi 0, %s375
      %s378 = sphi 0, %s377
      %s392 = sphi 0, %s378
      %s398 = sphi 0, %s400
      %s401 = sphi 0, %s398
      %s402 = sphi 0, %s401
      %s418 = sphi 0, %s402
    $region4: #{net_forward.1} parent=1 // loop_header_branch
      %29 = sbr.rel (%p27) target = $region8
    $region5: #{net_forward.1} parent=1 // loop_body
      %s31 = ssub.s32 %s26, 1
      %s32 = ssub.s32 %s26, 2
      %s33 = sadd.s32 %s26, 1
      %s34 = ssub.s32 %s26, %s33
      %p35 = scmp.eq.s32.totalorder %s34, 0
      %s37 = sadd.s32 %s36, 1
      %s38 = scalar_select %p35, %s36, %s37
      %p41 = pneg %p35
      %p42 = scmp.eq.s32.totalorder %s26, 1
      %p43 = por %p41, %p42
      %p44 = scmp.ne.s32.totalorder %s36, %s39
      %p45 = scmp.eq.s32.totalorder %s26, 0
      %p46 = por %p44, %p45
      %p47 = scmp.ne.s32.totalorder %s36, %s39
      %p48 = scmp.eq.s32.totalorder %s31, 1
      %p49 = por %p47, %p48
      %p50 = scmp.ne.s32.totalorder %s39, %s40
      %p51 = scmp.eq.s32.totalorder %s31, 0
      %p52 = por %p50, %p51
      %p53 = scmp.ne.s32.totalorder %s39, %s40
      %p54 = scmp.eq.s32.totalorder %s32, 1
      %p55 = por %p53, %p54
      %p57 = scmp.ne.s32.totalorder %s40, %s56
      %p58 = scmp.eq.s32.totalorder %s32, 0
      %p59 = por %p57, %p58
      %s61 = sadd.s32 %s60, 1
      %p64 = scmp.eq.s32.totalorder %s26, 1
      %p65 = scmp.ne.s32.totalorder %s60, %s62
      %p66 = scmp.eq.s32.totalorder %s26, 0
      %p67 = por %p65, %p66
      %p68 = scmp.ne.s32.totalorder %s60, %s62
      %p69 = scmp.eq.s32.totalorder %s31, 1
      %p70 = por %p68, %p69
      %p71 = scmp.ne.s32.totalorder %s62, %s63
      %p72 = scmp.eq.s32.totalorder %s31, 0
      %p73 = por %p71, %p72
      %p74 = scmp.ne.s32.totalorder %s62, %s63
      %p75 = scmp.eq.s32.totalorder %s32, 1
      %p76 = por %p74, %p75
      %p78 = scmp.ne.s32.totalorder %s63, %s77
      %p79 = scmp.eq.s32.totalorder %s32, 0
      %p80 = por %p78, %p79
      %s82 = sadd.s32 %s81, 1
      %p85 = scmp.eq.s32.totalorder %s26, 1
      %p86 = scmp.ne.s32.totalorder %s81, %s83
      %p87 = scmp.eq.s32.totalorder %s26, 0
      %p88 = por %p86, %p87
      %p89 = scmp.ne.s32.totalorder %s81, %s83
      %p90 = scmp.eq.s32.totalorder %s31, 1
      %p91 = por %p89, %p90
      %p92 = scmp.ne.s32.totalorder %s83, %s84
      %p93 = scmp.eq.s32.totalorder %s31, 0
      %p94 = por %p92, %p93
      %p95 = scmp.ne.s32.totalorder %s83, %s84
      %p96 = scmp.eq.s32.totalorder %s32, 1
      %p97 = por %p95, %p96
      %p99 = scmp.ne.s32.totalorder %s84, %s98
      %p100 = scmp.eq.s32.totalorder %s32, 0
      %p101 = por %p99, %p100
      %s103 = sadd.s32 %s102, 1
      %p106 = scmp.eq.s32.totalorder %s26, 1
      %p107 = scmp.ne.s32.totalorder %s102, %s104
      %p108 = scmp.eq.s32.totalorder %s26, 0
      %p109 = por %p107, %p108
      %p110 = scmp.ne.s32.totalorder %s102, %s104
      %p111 = scmp.eq.s32.totalorder %s31, 1
      %p112 = por %p110, %p111
      %p113 = scmp.ne.s32.totalorder %s104, %s105
      %p114 = scmp.eq.s32.totalorder %s31, 0
      %p115 = por %p113, %p114
      %p116 = scmp.ne.s32.totalorder %s104, %s105
      %p117 = scmp.eq.s32.totalorder %s32, 1
      %p118 = por %p116, %p117
      %p120 = scmp.ne.s32.totalorder %s105, %s119
      %p121 = scmp.eq.s32.totalorder %s32, 0
      %p122 = por %p120, %p121
      %s124 = sadd.s32 %s123, 1
      %p127 = scmp.eq.s32.totalorder %s26, 1
      %p128 = scmp.ne.s32.totalorder %s123, %s125
      %p129 = scmp.eq.s32.totalorder %s26, 0
      %p130 = por %p128, %p129
      %p131 = scmp.ne.s32.totalorder %s123, %s125
      %p132 = scmp.eq.s32.totalorder %s31, 1
      %p133 = por %p131, %p132
      %p134 = scmp.ne.s32.totalorder %s125, %s126
      %p135 = scmp.eq.s32.totalorder %s31, 0
      %p136 = por %p134, %p135
      %p137 = scmp.ne.s32.totalorder %s125, %s126
      %p138 = scmp.eq.s32.totalorder %s32, 1
      %p139 = por %p137, %p138
      %p141 = scmp.ne.s32.totalorder %s126, %s140
      %p142 = scmp.eq.s32.totalorder %s32, 0
      %p143 = por %p141, %p142
      %s145 = sadd.s32 %s144, 1
      %p148 = scmp.eq.s32.totalorder %s26, 1
      %p149 = scmp.ne.s32.totalorder %s144, %s146
      %p150 = scmp.eq.s32.totalorder %s26, 0
      %p151 = por %p149, %p150
      %p152 = scmp.ne.s32.totalorder %s144, %s146
      %p153 = scmp.eq.s32.totalorder %s31, 1
      %p154 = por %p152, %p153
      %p155 = scmp.ne.s32.totalorder %s146, %s147
      %p156 = scmp.eq.s32.totalorder %s31, 0
      %p157 = por %p155, %p156
      %p158 = scmp.ne.s32.totalorder %s146, %s147
      %p159 = scmp.eq.s32.totalorder %s32, 1
      %p160 = por %p158, %p159
      %p162 = scmp.ne.s32.totalorder %s147, %s161
      %p163 = scmp.eq.s32.totalorder %s32, 0
      %p164 = por %p162, %p163
      %s166 = sadd.s32 %s165, 1
      %p169 = scmp.eq.s32.totalorder %s26, 1
      %p170 = scmp.ne.s32.totalorder %s165, %s167
      %p171 = scmp.eq.s32.totalorder %s26, 0
      %p172 = por %p170, %p171
      %p173 = scmp.ne.s32.totalorder %s165, %s167
      %p174 = scmp.eq.s32.totalorder %s31, 1
      %p175 = por %p173, %p174
      %p176 = scmp.ne.s32.totalorder %s167, %s168
      %p177 = scmp.eq.s32.totalorder %s31, 0
      %p178 = por %p176, %p177
      %p179 = scmp.ne.s32.totalorder %s167, %s168
      %p180 = scmp.eq.s32.totalorder %s32, 1
      %p181 = por %p179, %p180
      %p183 = scmp.ne.s32.totalorder %s168, %s182
      %p184 = scmp.eq.s32.totalorder %s32, 0
      %p185 = por %p183, %p184
      %s187 = sadd.s32 %s186, 1
      %p190 = scmp.eq.s32.totalorder %s26, 1
      %p191 = scmp.ne.s32.totalorder %s186, %s188
      %p192 = scmp.eq.s32.totalorder %s26, 0
      %p193 = por %p191, %p192
      %p194 = scmp.ne.s32.totalorder %s186, %s188
      %p195 = scmp.eq.s32.totalorder %s31, 1
      %p196 = por %p194, %p195
      %p197 = scmp.ne.s32.totalorder %s188, %s189
      %p198 = scmp.eq.s32.totalorder %s31, 0
      %p199 = por %p197, %p198
      %p200 = scmp.ne.s32.totalorder %s188, %s189
      %p201 = scmp.eq.s32.totalorder %s32, 1
      %p202 = por %p200, %p201
      %p204 = scmp.ne.s32.totalorder %s189, %s203
      %p205 = scmp.eq.s32.totalorder %s32, 0
      %p206 = por %p204, %p205
      %s208 = sadd.s32 %s207, 1
      %p211 = scmp.eq.s32.totalorder %s26, 1
      %p212 = scmp.ne.s32.totalorder %s207, %s209
      %p213 = scmp.eq.s32.totalorder %s26, 0
      %p214 = por %p212, %p213
      %p215 = scmp.ne.s32.totalorder %s207, %s209
      %p216 = scmp.eq.s32.totalorder %s31, 1
      %p217 = por %p215, %p216
      %p218 = scmp.ne.s32.totalorder %s209, %s210
      %p219 = scmp.eq.s32.totalorder %s31, 0
      %p220 = por %p218, %p219
      %p221 = scmp.ne.s32.totalorder %s209, %s210
      %p222 = scmp.eq.s32.totalorder %s32, 1
      %p223 = por %p221, %p222
      %p225 = scmp.ne.s32.totalorder %s210, %s224
      %p226 = scmp.eq.s32.totalorder %s32, 0
      %p227 = por %p225, %p226
      %s229 = sadd.s32 %s228, 1
      %p232 = scmp.eq.s32.totalorder %s26, 1
      %p233 = scmp.ne.s32.totalorder %s228, %s230
      %p234 = scmp.eq.s32.totalorder %s26, 0
      %p235 = por %p233, %p234
      %p236 = scmp.ne.s32.totalorder %s228, %s230
      %p237 = scmp.eq.s32.totalorder %s31, 1
      %p238 = por %p236, %p237
      %p239 = scmp.ne.s32.totalorder %s230, %s231
      %p240 = scmp.eq.s32.totalorder %s31, 0
      %p241 = por %p239, %p240
      %p242 = scmp.ne.s32.totalorder %s230, %s231
      %p243 = scmp.eq.s32.totalorder %s32, 1
      %p244 = por %p242, %p243
      %p246 = scmp.ne.s32.totalorder %s231, %s245
      %p247 = scmp.eq.s32.totalorder %s32, 0
      %p248 = por %p246, %p247
      %s250 = sadd.s32 %s249, 1
      %p253 = scmp.eq.s32.totalorder %s26, 1
      %p254 = scmp.ne.s32.totalorder %s249, %s251
      %p255 = scmp.eq.s32.totalorder %s26, 0
      %p256 = por %p254, %p255
      %p257 = scmp.ne.s32.totalorder %s249, %s251
      %p258 = scmp.eq.s32.totalorder %s31, 1
      %p259 = por %p257, %p258
      %p260 = scmp.ne.s32.totalorder %s251, %s252
      %p261 = scmp.eq.s32.totalorder %s31, 0
      %p262 = por %p260, %p261
      %p263 = scmp.ne.s32.totalorder %s251, %s252
      %p264 = scmp.eq.s32.totalorder %s32, 1
      %p265 = por %p263, %p264
      %p267 = scmp.ne.s32.totalorder %s252, %s266
      %p268 = scmp.eq.s32.totalorder %s32, 0
      %p269 = por %p267, %p268
      %s271 = sadd.s32 %s270, 1
      %p274 = scmp.eq.s32.totalorder %s26, 1
      %p275 = scmp.ne.s32.totalorder %s270, %s272
      %p276 = scmp.eq.s32.totalorder %s26, 0
      %p277 = por %p275, %p276
      %p278 = scmp.ne.s32.totalorder %s270, %s272
      %p279 = scmp.eq.s32.totalorder %s31, 1
      %p280 = por %p278, %p279
      %p281 = scmp.ne.s32.totalorder %s272, %s273
      %p282 = scmp.eq.s32.totalorder %s31, 0
      %p283 = por %p281, %p282
      %p284 = scmp.ne.s32.totalorder %s272, %s273
      %p285 = scmp.eq.s32.totalorder %s32, 1
      %p286 = por %p284, %p285
      %p288 = scmp.ne.s32.totalorder %s273, %s287
      %p289 = scmp.eq.s32.totalorder %s32, 0
      %p290 = por %p288, %p289
      %s292 = sadd.s32 %s291, 1
      %p295 = scmp.eq.s32.totalorder %s26, 1
      %p296 = scmp.ne.s32.totalorder %s291, %s293
      %p297 = scmp.eq.s32.totalorder %s26, 0
      %p298 = por %p296, %p297
      %p299 = scmp.ne.s32.totalorder %s291, %s293
      %p300 = scmp.eq.s32.totalorder %s31, 1
      %p301 = por %p299, %p300
      %p302 = scmp.ne.s32.totalorder %s293, %s294
      %p303 = scmp.eq.s32.totalorder %s31, 0
      %p304 = por %p302, %p303
      %p305 = scmp.ne.s32.totalorder %s293, %s294
      %p306 = scmp.eq.s32.totalorder %s32, 1
      %p307 = por %p305, %p306
      %p309 = scmp.ne.s32.totalorder %s294, %s308
      %p310 = scmp.eq.s32.totalorder %s32, 0
      %p311 = por %p309, %p310
      %s313 = sadd.s32 %s312, 1
      %p316 = scmp.eq.s32.totalorder %s26, 1
      %p317 = scmp.ne.s32.totalorder %s312, %s314
      %p318 = scmp.eq.s32.totalorder %s26, 0
      %p319 = por %p317, %p318
      %p320 = scmp.ne.s32.totalorder %s312, %s314
      %p321 = scmp.eq.s32.totalorder %s31, 1
      %p322 = por %p320, %p321
      %p323 = scmp.ne.s32.totalorder %s314, %s315
      %p324 = scmp.eq.s32.totalorder %s31, 0
      %p325 = por %p323, %p324
      %p326 = scmp.ne.s32.totalorder %s314, %s315
      %p327 = scmp.eq.s32.totalorder %s32, 1
      %p328 = por %p326, %p327
      %p330 = scmp.ne.s32.totalorder %s315, %s329
      %p331 = scmp.eq.s32.totalorder %s32, 0
      %p332 = por %p330, %p331
      %s334 = sadd.s32 %s333, 1
      %p337 = scmp.eq.s32.totalorder %s26, 1
      %p338 = scmp.ne.s32.totalorder %s333, %s335
      %p339 = scmp.eq.s32.totalorder %s26, 0
      %p340 = por %p338, %p339
      %p341 = scmp.ne.s32.totalorder %s333, %s335
      %p342 = scmp.eq.s32.totalorder %s31, 1
      %p343 = por %p341, %p342
      %p344 = scmp.ne.s32.totalorder %s335, %s336
      %p345 = scmp.eq.s32.totalorder %s31, 0
      %p346 = por %p344, %p345
      %p347 = scmp.ne.s32.totalorder %s335, %s336
      %p348 = scmp.eq.s32.totalorder %s32, 1
      %p349 = por %p347, %p348
      %p351 = scmp.ne.s32.totalorder %s336, %s350
      %p352 = scmp.eq.s32.totalorder %s32, 0
      %p353 = por %p351, %p352
      %s355 = sadd.s32 %s354, 1
      %p358 = scmp.eq.s32.totalorder %s26, 1
      %p359 = scmp.ne.s32.totalorder %s354, %s356
      %p360 = scmp.eq.s32.totalorder %s26, 0
      %p361 = por %p359, %p360
      %p362 = scmp.ne.s32.totalorder %s354, %s356
      %p363 = scmp.eq.s32.totalorder %s31, 1
      %p364 = por %p362, %p363
      %p365 = scmp.ne.s32.totalorder %s356, %s357
      %p366 = scmp.eq.s32.totalorder %s31, 0
      %p367 = por %p365, %p366
      %p368 = scmp.ne.s32.totalorder %s356, %s357
      %p369 = scmp.eq.s32.totalorder %s32, 1
      %p370 = por %p368, %p369
      %p372 = scmp.ne.s32.totalorder %s357, %s371
      %p373 = scmp.eq.s32.totalorder %s32, 0
      %p374 = por %p372, %p373
      %s376 = sadd.s32 %s375, 1
      %p379 = scmp.eq.s32.totalorder %s26, 1
      %p380 = scmp.ne.s32.totalorder %s375, %s377
      %p381 = scmp.eq.s32.totalorder %s26, 0
      %p382 = por %p380, %p381
      %p383 = scmp.ne.s32.totalorder %s375, %s377
      %p384 = scmp.eq.s32.totalorder %s31, 1
      %p385 = por %p383, %p384
      %p386 = scmp.ne.s32.totalorder %s377, %s378
      %p387 = scmp.eq.s32.totalorder %s31, 0
      %p388 = por %p386, %p387
      %p389 = scmp.ne.s32.totalorder %s377, %s378
      %p390 = scmp.eq.s32.totalorder %s32, 1
      %p391 = por %p389, %p390
      %p393 = scmp.ne.s32.totalorder %s378, %s392
      %p394 = scmp.eq.s32.totalorder %s32, 0
      %p395 = por %p393, %p394
      %s396 = ssub.s32 %s26, %s33
      %p397 = scmp.eq.s32.totalorder %s396, 0
      %s399 = sadd.s32 %s398, 1
      %s400 = scalar_select %p397, %s398, %s399
      %p403 = pneg %p397
      %p404 = scmp.eq.s32.totalorder %s26, 1
      %p405 = por %p403, %p404
      %p406 = scmp.ne.s32.totalorder %s398, %s401
      %p407 = scmp.eq.s32.totalorder %s26, 0
      %p408 = por %p406, %p407
      %p409 = scmp.ne.s32.totalorder %s398, %s401
      %p410 = scmp.eq.s32.totalorder %s31, 1
      %p411 = por %p409, %p410
      %p412 = scmp.ne.s32.totalorder %s401, %s402
      %p413 = scmp.eq.s32.totalorder %s31, 0
      %p414 = por %p412, %p413
      %p415 = scmp.ne.s32.totalorder %s401, %s402
      %p416 = scmp.eq.s32.totalorder %s32, 1
      %p417 = por %p415, %p416
      %p419 = scmp.ne.s32.totalorder %s402, %s418
      %p420 = scmp.eq.s32.totalorder %s32, 0
      %p421 = por %p419, %p420
      %p422 = scmp.le.s32.totalorder 1, %s26
      %p423 = scmp.lt.s32.totalorder %s26, 3
      %p424 = pnand %p422, %p423
      %p425 = pneg %p424
      // Predicated region
      $region9: #{net_forward.1} parent=5 // pred_check
        _
      $region10: #{net_forward.1} parent=5 // pred_check_branch
        %427 = sbr.rel (%p424) target = $region12
      $region11: #{net_forward.1} parent=5 // pred_region
        %s428 = ssub.s32 %s26, 1
        // Predicated region
        $region13: #{net_forward.1} parent=11 // pred_check
          %p429 = pneg %p73
        $region14: #{net_forward.1} parent=11 // pred_check_branch
          %431 = sbr.rel (%p429) target = $region16
        $region15: #{net_forward.1} parent=11 // pred_region
          _
        $region16: #{net_forward.1} parent=11 // pred_fallthru
          _
        // Predicated region
        $region17: #{net_forward.1} parent=11 // pred_check
          %p432 = pneg %p94
        $region18: #{net_forward.1} parent=11 // pred_check_branch
          %434 = sbr.rel (%p432) target = $region20
        $region19: #{net_forward.1} parent=11 // pred_region
          _
        $region20: #{net_forward.1} parent=11 // pred_fallthru
          _
        // Predicated region
        $region21: #{net_forward.1} parent=11 // pred_check
          %p435 = pneg %p115
        $region22: #{net_forward.1} parent=11 // pred_check_branch
          %437 = sbr.rel (%p435) target = $region24
        $region23: #{net_forward.1} parent=11 // pred_region
          _
        $region24: #{net_forward.1} parent=11 // pred_fallthru
          _
        // Predicated region
        $region25: #{net_forward.1} parent=11 // pred_check
          %p438 = pneg %p136
        $region26: #{net_forward.1} parent=11 // pred_check_branch
          %440 = sbr.rel (%p438) target = $region28
        $region27: #{net_forward.1} parent=11 // pred_region
          _
        $region28: #{net_forward.1} parent=11 // pred_fallthru
          _
        // Predicated region
        $region29: #{net_forward.1} parent=11 // pred_check
          %p441 = pneg %p157
        $region30: #{net_forward.1} parent=11 // pred_check_branch
          %443 = sbr.rel (%p441) target = $region32
        $region31: #{net_forward.1} parent=11 // pred_region
          _
        $region32: #{net_forward.1} parent=11 // pred_fallthru
          _
        // Predicated region
        $region33: #{net_forward.1} parent=11 // pred_check
          %p444 = pneg %p178
        $region34: #{net_forward.1} parent=11 // pred_check_branch
          %446 = sbr.rel (%p444) target = $region36
        $region35: #{net_forward.1} parent=11 // pred_region
          _
        $region36: #{net_forward.1} parent=11 // pred_fallthru
          _
        // Predicated region
        $region37: #{net_forward.1} parent=11 // pred_check
          %p447 = pneg %p199
        $region38: #{net_forward.1} parent=11 // pred_check_branch
          %449 = sbr.rel (%p447) target = $region40
        $region39: #{net_forward.1} parent=11 // pred_region
          _
        $region40: #{net_forward.1} parent=11 // pred_fallthru
          _
        // Predicated region
        $region41: #{net_forward.1} parent=11 // pred_check
          %p450 = pneg %p220
        $region42: #{net_forward.1} parent=11 // pred_check_branch
          %452 = sbr.rel (%p450) target = $region44
        $region43: #{net_forward.1} parent=11 // pred_region
          _
        $region44: #{net_forward.1} parent=11 // pred_fallthru
          _
        // Predicated region
        $region45: #{net_forward.1} parent=11 // pred_check
          %p453 = pneg %p241
        $region46: #{net_forward.1} parent=11 // pred_check_branch
          %455 = sbr.rel (%p453) target = $region48
        $region47: #{net_forward.1} parent=11 // pred_region
          _
        $region48: #{net_forward.1} parent=11 // pred_fallthru
          _
        // Predicated region
        $region49: #{net_forward.1} parent=11 // pred_check
          %p456 = pneg %p262
        $region50: #{net_forward.1} parent=11 // pred_check_branch
          %458 = sbr.rel (%p456) target = $region52
        $region51: #{net_forward.1} parent=11 // pred_region
          _
        $region52: #{net_forward.1} parent=11 // pred_fallthru
          _
        // Predicated region
        $region53: #{net_forward.1} parent=11 // pred_check
          %p459 = pneg %p283
        $region54: #{net_forward.1} parent=11 // pred_check_branch
          %461 = sbr.rel (%p459) target = $region56
        $region55: #{net_forward.1} parent=11 // pred_region
          _
        $region56: #{net_forward.1} parent=11 // pred_fallthru
          _
        // Predicated region
        $region57: #{net_forward.1} parent=11 // pred_check
          %p462 = pneg %p304
        $region58: #{net_forward.1} parent=11 // pred_check_branch
          %464 = sbr.rel (%p462) target = $region60
        $region59: #{net_forward.1} parent=11 // pred_region
          _
        $region60: #{net_forward.1} parent=11 // pred_fallthru
          _
        // Predicated region
        $region61: #{net_forward.1} parent=11 // pred_check
          %p465 = pneg %p325
        $region62: #{net_forward.1} parent=11 // pred_check_branch
          %467 = sbr.rel (%p465) target = $region64
        $region63: #{net_forward.1} parent=11 // pred_region
          _
        $region64: #{net_forward.1} parent=11 // pred_fallthru
          _
        // Predicated region
        $region65: #{net_forward.1} parent=11 // pred_check
          %p468 = pneg %p346
        $region66: #{net_forward.1} parent=11 // pred_check_branch
          %470 = sbr.rel (%p468) target = $region68
        $region67: #{net_forward.1} parent=11 // pred_region
          _
        $region68: #{net_forward.1} parent=11 // pred_fallthru
          _
        // Predicated region
        $region69: #{net_forward.1} parent=11 // pred_check
          %p471 = pneg %p367
        $region70: #{net_forward.1} parent=11 // pred_check_branch
          %473 = sbr.rel (%p471) target = $region72
        $region71: #{net_forward.1} parent=11 // pred_region
          _
        $region72: #{net_forward.1} parent=11 // pred_fallthru
          _
        // Predicated region
        $region73: #{net_forward.1} parent=11 // pred_check
          %p474 = pneg %p388
        $region74: #{net_forward.1} parent=11 // pred_check_branch
          %476 = sbr.rel (%p474) target = $region76
        $region75: #{net_forward.1} parent=11 // pred_region
          _
        $region76: #{net_forward.1} parent=11 // pred_fallthru
          _
      $region12: #{net_forward.1} parent=5 // pred_fallthru
        _
      %p477 = scmp.lt.s32.totalorder %s26, 2
      // Predicated region
      $region77: #{net_forward.1} parent=5 // pred_check
        %p478 = pneg %p477
      $region78: #{net_forward.1} parent=5 // pred_check_branch
        %480 = sbr.rel (%p478) target = $region80
      $region79: #{net_forward.1} parent=5 // pred_region
        // Predicated region
        $region81: #{net_forward.1} parent=79 // pred_check
          %p481 = pneg %p46
        $region82: #{net_forward.1} parent=79 // pred_check_branch
          %483 = sbr.rel (%p481) target = $region84
        $region83: #{net_forward.1} parent=79 // pred_region
          %p484 = scmp.lt.s32.totalorder %s26, 1
          %s485 = scalar_select %p484, %s26, 1
          %s486 = smul.addr %s485, 5
          %s487 = smul.addr %s486, 8
          %s488 = scalar_lea.vmem %s0, %s487
        $region84: #{net_forward.1} parent=79 // pred_fallthru
          _
      $region80: #{net_forward.1} parent=5 // pred_fallthru
        _
      %p489 = scmp.le.s32.totalorder 1, %s26
      %p490 = scmp.lt.s32.totalorder %s26, 3
      %p491 = pnand %p489, %p490
      %p492 = pneg %p491
      // Predicated region
      $region85: #{net_forward.1} parent=5 // pred_check
        _
      $region86: #{net_forward.1} parent=5 // pred_check_branch
        %494 = sbr.rel (%p491) target = $region88
      $region87: #{net_forward.1} parent=5 // pred_region
        %s495 = ssub.s32 %s26, 1
        %p496 = scmp.lt.s32.totalorder %s31, 1
        %s497 = scalar_select %p496, %s31, 1
        %s498 = smul.addr %s497, 5
        %s499 = smul.addr %s498, 8
        %s500 = scalar_lea.vmem %s0, %s499
        %p501 = pneg %p52
        %p502 = pneg %p49
        %p503 = pneg %p73
        %p504 = pneg %p70
        %p505 = pneg %p94
        %p506 = pneg %p91
        %p507 = pneg %p115
        %p508 = pneg %p112
        %p509 = pneg %p136
        %p510 = pneg %p133
        %p511 = pneg %p157
        %p512 = pneg %p154
        %p513 = pneg %p178
        %p514 = pneg %p175
        %p515 = pneg %p199
        %p516 = pneg %p196
        %p517 = pneg %p220
        %p518 = pneg %p217
        %p519 = pneg %p241
        %p520 = pneg %p238
        %p521 = pneg %p262
        %p522 = pneg %p259
        %p523 = pneg %p283
        %p524 = pneg %p280
        %p525 = pneg %p304
        %p526 = pneg %p301
        %p527 = pneg %p325
        %p528 = pneg %p322
        %p529 = pneg %p346
        %p530 = pneg %p343
        %p531 = pneg %p367
        %p532 = pneg %p364
        %p533 = pneg %p388
        %p534 = pneg %p385
        %p535 = pneg %p414
        %p536 = pneg %p411
        %s537 = sand.u32 %s401, 1
        %s538 = scalar_lea.sflag [#allocation3], %s537
        %s539 = sand.u32 %s401, 1
        %s540 = scalar_lea.vmem [#allocation2], %s539
        %p541 = scmp.lt.s32.totalorder %s31, 1
        %s542 = scalar_select %p541, %s31, 1
        %s543 = smul.addr %s542, 5
        %s544 = smul.addr %s543, 8
        %s545 = scalar_lea.vmem %s0, %s544
        %v546 = vld [vmem:[%s545] sm:$0xff]
        %v547 = vld [vmem:[%s545 + $0x8] sm:$0xff]
        %v548 = vld [vmem:[%s545 + $0x10] sm:$0xff]
        %v549 = vld [vmem:[%s545 + $0x18] sm:$0xff]
        %v550 = vld [vmem:[%s545 + $0x20] sm:$0x7f]
        %v551 = vld [vmem:[%s1] sm:$0xf]
        %v552 = vlaneseq
        %v553 = vshrl.u32 %v552, 7
        %v554 = vadd.s32 %v553, 8
        %v555 = vadd.s32 %v553, 16
        %v556 = vadd.s32 %v553, 24
        %v557 = vadd.s32 %v553, 32
        %v558 = vlaneseq
        %v559 = vand.u32 %v558, 127
        %v560 = vadd.s32 %v553, 4294967295
        %v561 = vadd.s32 %v554, 4294967295
        %v562 = vadd.s32 %v555, 4294967295
        %v563 = vadd.s32 %v556, 4294967295
        %v564 = vadd.s32 %v557, 4294967295
        %vm565 = vcmp.gt.s32.totalorder %v560, 0
        %v566 = vsel %vm565, %v560, 0
        %vm567 = vcmp.gt.s32.totalorder %v561, 0
        %v568 = vsel %vm567, %v561, 0
        %vm569 = vcmp.gt.s32.totalorder %v562, 0
        %v570 = vsel %vm569, %v562, 0
        %vm571 = vcmp.gt.s32.totalorder %v563, 0
        %v572 = vsel %vm571, %v563, 0
        %vm573 = vcmp.gt.s32.totalorder %v564, 0
        %v574 = vsel %vm573, %v564, 0
        %vm575 = vcmp.lt.s32.totalorder %v566, 38
        %v576 = vsel %vm575, %v566, 38
        %vm577 = vcmp.lt.s32.totalorder %v568, 38
        %v578 = vsel %vm577, %v568, 38
        %vm579 = vcmp.lt.s32.totalorder %v570, 38
        %v580 = vsel %vm579, %v570, 38
        %vm581 = vcmp.lt.s32.totalorder %v572, 38
        %v582 = vsel %vm581, %v572, 38
        %vm583 = vcmp.lt.s32.totalorder %v574, 38
        %v584 = vsel %vm583, %v574, 38
        %vm585 = vcmp.eq.s32.totalorder %v559, %v576
        %vm586 = vcmp.eq.s32.totalorder %v559, %v578
        %vm587 = vcmp.eq.s32.totalorder %v559, %v580
        %vm588 = vcmp.eq.s32.totalorder %v559, %v582
        %vm589 = vcmp.eq.s32.totalorder %v559, %v584
        %v590 = vsel %vm585, 1, 0
        %v591 = vsel %vm586, 1, 0
        %v592 = vsel %vm587, 1, 0
        %v593 = vsel %vm588, 1, 0
        %v594 = vsel %vm589, 1, 0
        %v595 = vcvt.s32.f32 %v590
        %v596 = vcvt.s32.f32 %v591
        %v597 = vcvt.s32.f32 %v592
        %v598 = vcvt.s32.f32 %v593
        %v599 = vcvt.s32.f32 %v594
        %vm600 = vcmp.gt.s32.totalorder %v553, 0
        %v601 = vsel %vm600, %v553, 0
        %vm602 = vcmp.gt.s32.totalorder %v554, 0
        %v603 = vsel %vm602, %v554, 0
        %vm604 = vcmp.gt.s32.totalorder %v555, 0
        %v605 = vsel %vm604, %v555, 0
        %vm606 = vcmp.gt.s32.totalorder %v556, 0
        %v607 = vsel %vm606, %v556, 0
        %vm608 = vcmp.gt.s32.totalorder %v557, 0
        %v609 = vsel %vm608, %v557, 0
        %vm610 = vcmp.lt.s32.totalorder %v601, 38
        %v611 = vsel %vm610, %v601, 38
        %vm612 = vcmp.lt.s32.totalorder %v603, 38
        %v613 = vsel %vm612, %v603, 38
        %vm614 = vcmp.lt.s32.totalorder %v605, 38
        %v615 = vsel %vm614, %v605, 38
        %vm616 = vcmp.lt.s32.totalorder %v607, 38
        %v617 = vsel %vm616, %v607, 38
        %vm618 = vcmp.lt.s32.totalorder %v609, 38
        %v619 = vsel %vm618, %v609, 38
        %vm620 = vcmp.eq.s32.totalorder %v559, %v611
        %vm621 = vcmp.eq.s32.totalorder %v559, %v613
        %vm622 = vcmp.eq.s32.totalorder %v559, %v615
        %vm623 = vcmp.eq.s32.totalorder %v559, %v617
        %vm624 = vcmp.eq.s32.totalorder %v559, %v619
        %v625 = vsel %vm620, 1, 0
        %v626 = vsel %vm621, 1, 0
        %v627 = vsel %vm622, 1, 0
        %v628 = vsel %vm623, 1, 0
        %v629 = vsel %vm624, 1, 0
        %v630 = vcvt.s32.f32 %v625
        %v631 = vcvt.s32.f32 %v626
        %v632 = vcvt.s32.f32 %v627
        %v633 = vcvt.s32.f32 %v628
        %v634 = vcvt.s32.f32 %v629
        %vm635 = vcmask 318464
        %v637 = vsel %vm635, %v595, 0
        %v640 = vsel %vm635, %v596, 0
        %v643 = vsel %vm635, %v597, 0
        %v646 = vsel %vm635, %v598, 0
        %v649 = vsel %vm635, %v599, 0
        %vm651 = vcmask 1046528
        %v653 = vsel %vm651, %v550, 0
        %655 = vmatpush.msra.mxu0 0.0
        %656 = vmatpush.msra.mxu0 0.0
        %657 = vmatpush.msra.mxu0 0.0
        %658 = vmatpush.msra.mxu0 0.0
        %659 = vmatpush.msra.mxu0 0.0
        %660 = vmatpush.msra.mxu0 0.0
        %661 = vmatpush.msra.mxu0 0.0
        %662 = vmatpush.msra.mxu0 0.0
        %663 = vmatpush.msra.mxu0 0.0
        %664 = vmatpush.msra.mxu0 0.0
        %665 = vmatpush.msra.mxu0 0.0
        %666 = vmatpush.msra.mxu0 %v653
        %667 = vmatpush.msra.mxu0 %v549
        %668 = vmatpush.msra.mxu0 %v548
        %669 = vmatpush.msra.mxu0 %v547
        %670 = vmatpush.msra.mxu0 %v546
        %671 = vmatmul.f32.gmra.mxu0 %v637
        %v672 = vpop.f32.mrf.mxu0
        %v673 = vadd.f32 0.0, %v672
        %674 = vmatmul.f32.gmra.mxu0 %v640
        %v675 = vpop.f32.mrf.mxu0
        %v676 = vadd.f32 0.0, %v675
        %677 = vmatmul.f32.gmra.mxu0 %v643
        %v678 = vpop.f32.mrf.mxu0
        %v679 = vadd.f32 0.0, %v678
        %680 = vmatmul.f32.gmra.mxu0 %v646
        %v681 = vpop.f32.mrf.mxu0
        %v682 = vadd.f32 0.0, %v681
        %683 = vmatmul.f32.gmra.mxu0 %v649
        %v684 = vpop.f32.mrf.mxu0
        %v685 = vadd.f32 0.0, %v684
        %686 = vdwg.mxu0
        %v688 = vsel %vm635, %v630, 0
        %v691 = vsel %vm635, %v631, 0
        %v694 = vsel %vm635, %v632, 0
        %v697 = vsel %vm635, %v633, 0
        %v700 = vsel %vm635, %v634, 0
        %702 = vmatpush.msra.mxu0 0.0
        %703 = vmatpush.msra.mxu0 0.0
        %704 = vmatpush.msra.mxu0 0.0
        %705 = vmatpush.msra.mxu0 0.0
        %706 = vmatpush.msra.mxu0 0.0
        %707 = vmatpush.msra.mxu0 0.0
        %708 = vmatpush.msra.mxu0 0.0
        %709 = vmatpush.msra.mxu0 0.0
        %710 = vmatpush.msra.mxu0 0.0
        %711 = vmatpush.msra.mxu0 0.0
        %712 = vmatpush.msra.mxu0 0.0
        %713 = vmatpush.msra.mxu0 %v653
        %714 = vmatpush.msra.mxu0 %v549
        %715 = vmatpush.msra.mxu0 %v548
        %716 = vmatpush.msra.mxu0 %v547
        %717 = vmatpush.msra.mxu0 %v546
        %718 = vmatmul.f32.gmra.mxu0 %v688
        %v719 = vpop.f32.mrf.mxu0
        %v720 = vadd.f32 0.0, %v719
        %721 = vmatmul.f32.gmra.mxu0 %v691
        %v722 = vpop.f32.mrf.mxu0
        %v723 = vadd.f32 0.0, %v722
        %724 = vmatmul.f32.gmra.mxu0 %v694
        %v725 = vpop.f32.mrf.mxu0
        %v726 = vadd.f32 0.0, %v725
        %727 = vmatmul.f32.gmra.mxu0 %v697
        %v728 = vpop.f32.mrf.mxu0
        %v729 = vadd.f32 0.0, %v728
        %730 = vmatmul.f32.gmra.mxu0 %v700
        %v731 = vpop.f32.mrf.mxu0
        %v732 = vadd.f32 0.0, %v731
        %733 = vdwg.mxu0
        %v735 = vrot.slane %v551, 1
        %v737 = vadd.f32 %v551, %v735
        %739 = vset.pattern.permute.xlu0 0
        %740 = vperm.xlu0 %739, %v673
        %v741 = vpop.permute.xlu0 %740
        %744 = vset.pattern.permute.xlu0 0
        %745 = vperm.xlu0 %744, %v676
        %v746 = vpop.permute.xlu0 %745
        %749 = vset.pattern.permute.xlu0 0
        %750 = vperm.xlu0 %749, %v679
        %v751 = vpop.permute.xlu0 %750
        %754 = vset.pattern.permute.xlu0 0
        %755 = vperm.xlu0 %754, %v682
        %v756 = vpop.permute.xlu0 %755
        %759 = vset.pattern.permute.xlu0 0
        %760 = vperm.xlu0 %759, %v685
        %v761 = vpop.permute.xlu0 %760
        %v763 = vperm.slane %v737, 0
        %v764 = vmul.f32 %v741, %v763
        %v765 = vmul.f32 %v746, %v763
        %v766 = vmul.f32 %v751, %v763
        %v767 = vmul.f32 %v756, %v763
        %v768 = vmul.f32 %v761, %v763
        %770 = vset.pattern.permute.xlu0 0
        %771 = vperm.xlu0 %770, %v720
        %v772 = vpop.permute.xlu0 %771
        %775 = vset.pattern.permute.xlu0 0
        %776 = vperm.xlu0 %775, %v723
        %v777 = vpop.permute.xlu0 %776
        %780 = vset.pattern.permute.xlu0 0
        %781 = vperm.xlu0 %780, %v726
        %v782 = vpop.permute.xlu0 %781
        %785 = vset.pattern.permute.xlu0 0
        %786 = vperm.xlu0 %785, %v729
        %v787 = vpop.permute.xlu0 %786
        %790 = vset.pattern.permute.xlu0 0
        %791 = vperm.xlu0 %790, %v732
        %v792 = vpop.permute.xlu0 %791
        %v794 = vperm.slane %v737, 2
        %v795 = vmul.f32 %v772, %v794
        %v796 = vmul.f32 %v777, %v794
        %v797 = vmul.f32 %v782, %v794
        %v798 = vmul.f32 %v787, %v794
        %v799 = vmul.f32 %v792, %v794
        %v800 = vadd.f32 %v764, %v795
        %v801 = vadd.f32 %v765, %v796
        %v802 = vadd.f32 %v766, %v797
        %v803 = vadd.f32 %v767, %v798
        %v804 = vadd.f32 %v768, %v799
        %v805 = vperm.slane %v551, 0
        %v806 = vmul.f32 %v741, %v805
        %v807 = vmul.f32 %v746, %v805
        %v808 = vmul.f32 %v751, %v805
        %v809 = vmul.f32 %v756, %v805
        %v810 = vmul.f32 %v761, %v805
        %811 = vset.pattern.permute.xlu0 1
        %812 = vperm.xlu0 %811, %v673
        %v813 = vpop.permute.xlu0 %812
        %815 = vset.pattern.permute.xlu0 1
        %816 = vperm.xlu0 %815, %v676
        %v817 = vpop.permute.xlu0 %816
        %819 = vset.pattern.permute.xlu0 1
        %820 = vperm.xlu0 %819, %v679
        %v821 = vpop.permute.xlu0 %820
        %823 = vset.pattern.permute.xlu0 1
        %824 = vperm.xlu0 %823, %v682
        %v825 = vpop.permute.xlu0 %824
        %827 = vset.pattern.permute.xlu0 1
        %828 = vperm.xlu0 %827, %v685
        %v829 = vpop.permute.xlu0 %828
        %v831 = vperm.slane %v551, 1
        %v832 = vmul.f32 %v813, %v831
        %v833 = vmul.f32 %v817, %v831
        %v834 = vmul.f32 %v821, %v831
        %v835 = vmul.f32 %v825, %v831
        %v836 = vmul.f32 %v829, %v831
        %v837 = vadd.f32 %v806, %v832
        %v838 = vadd.f32 %v807, %v833
        %v839 = vadd.f32 %v808, %v834
        %v840 = vadd.f32 %v809, %v835
        %v841 = vadd.f32 %v810, %v836
        %v842 = vperm.slane %v551, 2
        %v843 = vmul.f32 %v772, %v842
        %v844 = vmul.f32 %v777, %v842
        %v845 = vmul.f32 %v782, %v842
        %v846 = vmul.f32 %v787, %v842
        %v847 = vmul.f32 %v792, %v842
        %v848 = vadd.f32 %v837, %v843
        %v849 = vadd.f32 %v838, %v844
        %v850 = vadd.f32 %v839, %v845
        %v851 = vadd.f32 %v840, %v846
        %v852 = vadd.f32 %v841, %v847
        %853 = vset.pattern.permute.xlu0 1
        %854 = vperm.xlu0 %853, %v720
        %v855 = vpop.permute.xlu0 %854
        %857 = vset.pattern.permute.xlu0 1
        %858 = vperm.xlu0 %857, %v723
        %v859 = vpop.permute.xlu0 %858
        %861 = vset.pattern.permute.xlu0 1
        %862 = vperm.xlu0 %861, %v726
        %v863 = vpop.permute.xlu0 %862
        %865 = vset.pattern.permute.xlu0 1
        %866 = vperm.xlu0 %865, %v729
        %v867 = vpop.permute.xlu0 %866
        %869 = vset.pattern.permute.xlu0 1
        %870 = vperm.xlu0 %869, %v732
        %v871 = vpop.permute.xlu0 %870
        %v873 = vperm.slane %v551, 3
        %v874 = vmul.f32 %v855, %v873
        %v875 = vmul.f32 %v859, %v873
        %v876 = vmul.f32 %v863, %v873
        %v877 = vmul.f32 %v867, %v873
        %v878 = vmul.f32 %v871, %v873
        %v879 = vadd.f32 %v848, %v874
        %v880 = vadd.f32 %v849, %v875
        %v881 = vadd.f32 %v850, %v876
        %v882 = vadd.f32 %v851, %v877
        %v883 = vadd.f32 %v852, %v878
        %v884 = vmax.f32 %v800, %v879
        %v885 = vmax.f32 %v801, %v880
        %v886 = vmax.f32 %v802, %v881
        %v887 = vmax.f32 %v803, %v882
        %v888 = vmax.f32 %v804, %v883
        %v889 = vmul.u32 %v553, 2
        %v890 = vmul.u32 %v554, 2
        %v891 = vmul.u32 %v555, 2
        %vm892 = vcmp.eq.s32.totalorder %v559, %v889
        %vm893 = vcmp.eq.s32.totalorder %v559, %v890
        %vm894 = vcmp.eq.s32.totalorder %v559, %v891
        %v895 = vsel %vm892, 1, 0
        %v896 = vsel %vm893, 1, 0
        %v897 = vsel %vm894, 1, 0
        %v898 = vcvt.s32.f32 %v895
        %v899 = vcvt.s32.f32 %v896
        %v900 = vcvt.s32.f32 %v897
        %v901 = vadd.s32 %v889, 1
        %v902 = vadd.s32 %v890, 1
        %v903 = vadd.s32 %v891, 1
        %vm904 = vcmp.eq.s32.totalorder %v559, %v901
        %vm905 = vcmp.eq.s32.totalorder %v559, %v902
        %vm906 = vcmp.eq.s32.totalorder %v559, %v903
        %v907 = vsel %vm904, 1, 0
        %v908 = vsel %vm905, 1, 0
        %v909 = vsel %vm906, 1, 0
        %v910 = vcvt.s32.f32 %v907
        %v911 = vcvt.s32.f32 %v908
        %v912 = vcvt.s32.f32 %v909
        %vm913 = vcmask 326656
        %v915 = vsel %vm913, %v898, 0
        %v918 = vsel %vm913, %v899, 0
        %v921 = vsel %vm913, %v900, 0
        %923 = vmatpush.msra.mxu0 0.0
        %924 = vmatpush.msra.mxu0 0.0
        %925 = vmatpush.msra.mxu0 0.0
        %926 = vmatpush.msra.mxu0 0.0
        %927 = vmatpush.msra.mxu0 0.0
        %928 = vmatpush.msra.mxu0 0.0
        %929 = vmatpush.msra.mxu0 0.0
        %930 = vmatpush.msra.mxu0 0.0
        %931 = vmatpush.msra.mxu0 0.0
        %932 = vmatpush.msra.mxu0 0.0
        %933 = vmatpush.msra.mxu0 0.0
        %934 = vmatpush.msra.mxu0 %v888
        %935 = vmatpush.msra.mxu0 %v887
        %936 = vmatpush.msra.mxu0 %v886
        %937 = vmatpush.msra.mxu0 %v885
        %938 = vmatpush.msra.mxu0 %v884
        %939 = vmatmul.f32.gmra.mxu0 %v915
        %v940 = vpop.f32.mrf.mxu0
        %v941 = vadd.f32 0.0, %v940
        %942 = vmatmul.f32.gmra.mxu0 %v918
        %v943 = vpop.f32.mrf.mxu0
        %v944 = vadd.f32 0.0, %v943
        %945 = vmatmul.f32.gmra.mxu0 %v921
        %v946 = vpop.f32.mrf.mxu0
        %v947 = vadd.f32 0.0, %v946
        %948 = vdwg.mxu0
        %v950 = vsel %vm913, %v910, 0
        %v953 = vsel %vm913, %v911, 0
        %v956 = vsel %vm913, %v912, 0
        %958 = vmatpush.msra.mxu0 0.0
        %959 = vmatpush.msra.mxu0 0.0
        %960 = vmatpush.msra.mxu0 0.0
        %961 = vmatpush.msra.mxu0 0.0
        %962 = vmatpush.msra.mxu0 0.0
        %963 = vmatpush.msra.mxu0 0.0
        %964 = vmatpush.msra.mxu0 0.0
        %965 = vmatpush.msra.mxu0 0.0
        %966 = vmatpush.msra.mxu0 0.0
        %967 = vmatpush.msra.mxu0 0.0
        %968 = vmatpush.msra.mxu0 0.0
        %969 = vmatpush.msra.mxu0 %v888
        %970 = vmatpush.msra.mxu0 %v887
        %971 = vmatpush.msra.mxu0 %v886
        %972 = vmatpush.msra.mxu0 %v885
        %973 = vmatpush.msra.mxu0 %v884
        %974 = vmatmul.f32.gmra.mxu0 %v950
        %v975 = vpop.f32.mrf.mxu0
        %v976 = vadd.f32 0.0, %v975
        %977 = vmatmul.f32.gmra.mxu0 %v953
        %v978 = vpop.f32.mrf.mxu0
        %v979 = vadd.f32 0.0, %v978
        %980 = vmatmul.f32.gmra.mxu0 %v956
        %v981 = vpop.f32.mrf.mxu0
        %v982 = vadd.f32 0.0, %v981
        %983 = vdwg.mxu0
        %v984 = vmax.f32 %v941, %v976
        %v985 = vmax.f32 %v944, %v979
        %v986 = vmax.f32 %v947, %v982
        %v987 = vld [vmem:[%s2] sm:$0x1]
        %v988 = vperm.slane %v987, 0
        %v989 = vmul.f32 %v984, %v988
        %v990 = vmul.f32 %v985, %v988
        %v991 = vmul.f32 %v986, %v988
        %v992 = vld [vmem:[%s2 + $0x1] sm:$0x1]
        %v993 = vperm.slane %v992, 0
        %v994 = vadd.f32 %v989, %v993
        %v995 = vadd.f32 %v990, %v993
        %v996 = vadd.f32 %v991, %v993
        %v997 = vmax.f32 %v994, 0.0
        %v998 = vmax.f32 %v995, 0.0
        %v999 = vmax.f32 %v996, 0.0
        %vm1000 = vcmp.lt.s32.totalorder %v566, 19
        %v1001 = vsel %vm1000, %v566, 19
        %vm1002 = vcmp.lt.s32.totalorder %v568, 19
        %v1003 = vsel %vm1002, %v568, 19
        %vm1004 = vcmp.lt.s32.totalorder %v570, 19
        %v1005 = vsel %vm1004, %v570, 19
        %vm1006 = vcmp.eq.s32.totalorder %v559, %v1001
        %vm1007 = vcmp.eq.s32.totalorder %v559, %v1003
        %vm1008 = vcmp.eq.s32.totalorder %v559, %v1005
        %v1009 = vsel %vm1006, 1, 0
        %v1010 = vsel %vm1007, 1, 0
        %v1011 = vsel %vm1008, 1, 0
        %v1012 = vcvt.s32.f32 %v1009
        %v1013 = vcvt.s32.f32 %v1010
        %v1014 = vcvt.s32.f32 %v1011
        %vm1015 = vcmp.lt.s32.totalorder %v601, 19
        %v1016 = vsel %vm1015, %v601, 19
        %vm1017 = vcmp.lt.s32.totalorder %v603, 19
        %v1018 = vsel %vm1017, %v603, 19
        %vm1019 = vcmp.lt.s32.totalorder %v605, 19
        %v1020 = vsel %vm1019, %v605, 19
        %vm1021 = vcmp.eq.s32.totalorder %v559, %v1016
        %vm1022 = vcmp.eq.s32.totalorder %v559, %v1018
        %vm1023 = vcmp.eq.s32.totalorder %v559, %v1020
        %v1024 = vsel %vm1021, 1, 0
        %v1025 = vsel %vm1022, 1, 0
        %v1026 = vsel %vm1023, 1, 0
        %v1027 = vcvt.s32.f32 %v1024
        %v1028 = vcvt.s32.f32 %v1025
        %v1029 = vcvt.s32.f32 %v1026
        %vm1030 = vcmask 162816
        %v1032 = vsel %vm1030, %v1012, 0
        %v1035 = vsel %vm1030, %v1013, 0
        %v1038 = vsel %vm1030, %v1014, 0
        %vm1040 = vcmask 1043456
        %v1042 = vsel %vm1040, %v999, 0
        %1044 = vmatpush.msra.mxu0 0.0
        %1045 = vmatpush.msra.mxu0 0.0
        %1046 = vmatpush.msra.mxu0 0.0
        %1047 = vmatpush.msra.mxu0 0.0
        %1048 = vmatpush.msra.mxu0 0.0
        %1049 = vmatpush.msra.mxu0 0.0
        %1050 = vmatpush.msra.mxu0 0.0
        %1051 = vmatpush.msra.mxu0 0.0
        %1052 = vmatpush.msra.mxu0 0.0
        %1053 = vmatpush.msra.mxu0 0.0
        %1054 = vmatpush.msra.mxu0 0.0
        %1055 = vmatpush.msra.mxu0 0.0
        %1056 = vmatpush.msra.mxu0 0.0
        %1057 = vmatpush.msra.mxu0 %v1042
        %1058 = vmatpush.msra.mxu0 %v998
        %1059 = vmatpush.msra.mxu0 %v997
        %1060 = vmatmul.f32.gmra.mxu0 %v1032
        %v1061 = vpop.f32.mrf.mxu0
        %v1062 = vadd.f32 0.0, %v1061
        %1063 = vmatmul.f32.gmra.mxu0 %v1035
        %v1064 = vpop.f32.mrf.mxu0
        %v1065 = vadd.f32 0.0, %v1064
        %1066 = vmatmul.f32.gmra.mxu0 %v1038
        %v1067 = vpop.f32.mrf.mxu0
        %v1068 = vadd.f32 0.0, %v1067
        %1069 = vdwg.mxu0
        %v1070 = vld [vmem:[%s3] sm:$0xff]
        %v1071 = vld [vmem:[%s3 + $0x8] sm:$0xff]
        %v1073 = vsel %vm1030, %v1027, 0
        %v1076 = vsel %vm1030, %v1028, 0
        %v1079 = vsel %vm1030, %v1029, 0
        %1081 = vmatpush.msra.mxu0 0.0
        %1082 = vmatpush.msra.mxu0 0.0
        %1083 = vmatpush.msra.mxu0 0.0
        %1084 = vmatpush.msra.mxu0 0.0
        %1085 = vmatpush.msra.mxu0 0.0
        %1086 = vmatpush.msra.mxu0 0.0
        %1087 = vmatpush.msra.mxu0 0.0
        %1088 = vmatpush.msra.mxu0 0.0
        %1089 = vmatpush.msra.mxu0 0.0
        %1090 = vmatpush.msra.mxu0 0.0
        %1091 = vmatpush.msra.mxu0 0.0
        %1092 = vmatpush.msra.mxu0 0.0
        %1093 = vmatpush.msra.mxu0 0.0
        %1094 = vmatpush.msra.mxu0 %v1042
        %1095 = vmatpush.msra.mxu0 %v998
        %1096 = vmatpush.msra.mxu0 %v997
        %1097 = vmatmul.f32.gmra.mxu0 %v1073
        %v1098 = vpop.f32.mrf.mxu0
        %v1099 = vadd.f32 0.0, %v1098
        %1100 = vmatmul.f32.gmra.mxu0 %v1076
        %v1101 = vpop.f32.mrf.mxu0
        %v1102 = vadd.f32 0.0, %v1101
        %1103 = vmatmul.f32.gmra.mxu0 %v1079
        %v1104 = vpop.f32.mrf.mxu0
        %v1105 = vadd.f32 0.0, %v1104
        %1106 = vdwg.mxu0
        %v1107 = vld [vmem:[%s4] sm:$0xff]
        %v1108 = vld [vmem:[%s4 + $0x8] sm:$0xff]
        %vm1109 = vcmask 130048
        %v1111 = vsel %vm1109, %v1099, 0
        %v1114 = vsel %vm1109, %v1102, 0
        %v1117 = vsel %vm1109, %v1105, 0
        %1119 = vmatpush.msra.mxu0 0.0
        %1120 = vmatpush.msra.mxu0 0.0
        %1121 = vmatpush.msra.mxu0 0.0
        %1122 = vmatpush.msra.mxu0 0.0
        %1123 = vmatpush.msra.mxu0 0.0
        %1124 = vmatpush.msra.mxu0 0.0
        %1125 = vmatpush.msra.mxu0 0.0
        %1126 = vmatpush.msra.mxu0 0.0
        %1127 = vmatpush.msra.mxu0 0.0
        %1128 = vmatpush.msra.mxu0 0.0
        %1129 = vmatpush.msra.mxu0 0.0
        %1130 = vmatpush.msra.mxu0 0.0
        %1131 = vmatpush.msra.mxu0 0.0
        %1132 = vmatpush.msra.mxu0 0.0
        %1133 = vmatpush.msra.mxu0 %v1108
        %1134 = vmatpush.msra.mxu0 %v1107
        %1135 = vmatmul.f32.gmra.mxu0 %v1111
        %v1136 = vpop.f32.mrf.mxu0
        %v1137 = vadd.f32 0.0, %v1136
        %1138 = vmatmul.f32.gmra.mxu0 %v1114
        %v1139 = vpop.f32.mrf.mxu0
        %v1140 = vadd.f32 0.0, %v1139
        %1141 = vmatmul.f32.gmra.mxu0 %v1117
        %v1142 = vpop.f32.mrf.mxu0
        %v1143 = vadd.f32 0.0, %v1142
        %1144 = vdwg.mxu0
        %v1146 = vsel %vm1109, %v1062, 0
        %v1149 = vsel %vm1109, %v1065, 0
        %v1152 = vsel %vm1109, %v1068, 0
        %1154 = vmatpush.msra.mxu0 0.0
        %1155 = vmatpush.msra.mxu0 0.0
        %1156 = vmatpush.msra.mxu0 0.0
        %1157 = vmatpush.msra.mxu0 0.0
        %1158 = vmatpush.msra.mxu0 0.0
        %1159 = vmatpush.msra.mxu0 0.0
        %1160 = vmatpush.msra.mxu0 0.0
        %1161 = vmatpush.msra.mxu0 0.0
        %1162 = vmatpush.msra.mxu0 0.0
        %1163 = vmatpush.msra.mxu0 0.0
        %1164 = vmatpush.msra.mxu0 0.0
        %1165 = vmatpush.msra.mxu0 0.0
        %1166 = vmatpush.msra.mxu0 0.0
        %1167 = vmatpush.msra.mxu0 0.0
        %1168 = vmatpush.msra.mxu0 %v1071
        %1169 = vmatpush.msra.mxu0 %v1070
        %1170 = vmatmul.f32.gmra.mxu0 %v1146
        %v1171 = vpop.f32.mrf.mxu0
        %v1172 = vadd.f32 %v1137, %v1171
        %1173 = vmatmul.f32.gmra.mxu0 %v1149
        %v1174 = vpop.f32.mrf.mxu0
        %v1175 = vadd.f32 %v1140, %v1174
        %1176 = vmatmul.f32.gmra.mxu0 %v1152
        %v1177 = vpop.f32.mrf.mxu0
        %v1178 = vadd.f32 %v1143, %v1177
        %1179 = vdwg.mxu0
        %vm1180 = vcmask 171008
        %v1181 = vsel %vm1180, %v898, 0
        %v1183 = vsel %vm1180, %v899, 0
        %vm1185 = vcmask 1044480
        %v1187 = vsel %vm1185, %v1178, 0
        %1189 = vmatpush.msra.mxu0 0.0
        %1190 = vmatpush.msra.mxu0 0.0
        %1191 = vmatpush.msra.mxu0 0.0
        %1192 = vmatpush.msra.mxu0 0.0
        %1193 = vmatpush.msra.mxu0 0.0
        %1194 = vmatpush.msra.mxu0 0.0
        %1195 = vmatpush.msra.mxu0 0.0
        %1196 = vmatpush.msra.mxu0 0.0
        %1197 = vmatpush.msra.mxu0 0.0
        %1198 = vmatpush.msra.mxu0 0.0
        %1199 = vmatpush.msra.mxu0 0.0
        %1200 = vmatpush.msra.mxu0 0.0
        %1201 = vmatpush.msra.mxu0 0.0
        %1202 = vmatpush.msra.mxu0 %v1187
        %1203 = vmatpush.msra.mxu0 %v1175
        %1204 = vmatpush.msra.mxu0 %v1172
        %1205 = vmatmul.f32.gmra.mxu0 %v1181
        %v1206 = vpop.f32.mrf.mxu0
        %v1207 = vadd.f32 0.0, %v1206
        %1208 = vmatmul.f32.gmra.mxu0 %v1183
        %v1209 = vpop.f32.mrf.mxu0
        %v1210 = vadd.f32 0.0, %v1209
        %1211 = vdwg.mxu0
        %v1212 = vsel %vm1180, %v910, 0
        %v1214 = vsel %vm1180, %v911, 0
        %1216 = vmatpush.msra.mxu0 0.0
        %1217 = vmatpush.msra.mxu0 0.0
        %1218 = vmatpush.msra.mxu0 0.0
        %1219 = vmatpush.msra.mxu0 0.0
        %1220 = vmatpush.msra.mxu0 0.0
        %1221 = vmatpush.msra.mxu0 0.0
        %1222 = vmatpush.msra.mxu0 0.0
        %1223 = vmatpush.msra.mxu0 0.0
        %1224 = vmatpush.msra.mxu0 0.0
        %1225 = vmatpush.msra.mxu0 0.0
        %1226 = vmatpush.msra.mxu0 0.0
        %1227 = vmatpush.msra.mxu0 0.0
        %1228 = vmatpush.msra.mxu0 0.0
        %1229 = vmatpush.msra.mxu0 %v1187
        %1230 = vmatpush.msra.mxu0 %v1175
        %1231 = vmatpush.msra.mxu0 %v1172
        %1232 = vmatmul.f32.gmra.mxu0 %v1212
        %v1233 = vpop.f32.mrf.mxu0
        %v1234 = vadd.f32 0.0, %v1233
        %1235 = vmatmul.f32.gmra.mxu0 %v1214
        %v1236 = vpop.f32.mrf.mxu0
        %v1237 = vadd.f32 0.0, %v1236
        %1238 = vdwg.mxu0
        %v1239 = vmax.f32 %v1207, %v1234
        %v1240 = vmax.f32 %v1210, %v1237
        %v1241 = vld [vmem:[%s5] sm:$0x1]
        %v1242 = vperm.slane %v1241, 0
        %v1243 = vmul.f32 %v1239, %v1242
        %v1244 = vmul.f32 %v1240, %v1242
        %v1245 = vld [vmem:[%s5 + $0x1] sm:$0x1]
        %v1246 = vperm.slane %v1245, 0
        %v1247 = vadd.f32 %v1243, %v1246
        %v1248 = vadd.f32 %v1244, %v1246
        %v1249 = vmax.f32 %v1247, 0.0
        %v1250 = vmax.f32 %v1248, 0.0
        %vm1251 = vcmp.lt.s32.totalorder %v566, 9
        %v1252 = vsel %vm1251, %v566, 9
        %vm1253 = vcmp.lt.s32.totalorder %v568, 9
        %v1254 = vsel %vm1253, %v568, 9
        %vm1255 = vcmp.eq.s32.totalorder %v559, %v1252
        %vm1256 = vcmp.eq.s32.totalorder %v559, %v1254
        %v1257 = vsel %vm1255, 1, 0
        %v1258 = vsel %vm1256, 1, 0
        %v1259 = vcvt.s32.f32 %v1257
        %v1260 = vcvt.s32.f32 %v1258
        %vm1261 = vcmp.lt.s32.totalorder %v601, 9
        %v1262 = vsel %vm1261, %v601, 9
        %vm1263 = vcmp.lt.s32.totalorder %v603, 9
        %v1264 = vsel %vm1263, %v603, 9
        %vm1265 = vcmp.eq.s32.totalorder %v559, %v1262
        %vm1266 = vcmp.eq.s32.totalorder %v559, %v1264
        %v1267 = vsel %vm1265, 1, 0
        %v1268 = vsel %vm1266, 1, 0
        %v1269 = vcvt.s32.f32 %v1267
        %v1270 = vcvt.s32.f32 %v1268
        %vm1271 = vcmask 80896
        %v1273 = vsel %vm1271, %v1259, 0
        %v1276 = vsel %vm1271, %v1260, 0
        %vm1278 = vcmask 1041408
        %v1280 = vsel %vm1278, %v1250, 0
        %1282 = vmatpush.msra.mxu0 0.0
        %1283 = vmatpush.msra.mxu0 0.0
        %1284 = vmatpush.msra.mxu0 0.0
        %1285 = vmatpush.msra.mxu0 0.0
        %1286 = vmatpush.msra.mxu0 0.0
        %1287 = vmatpush.msra.mxu0 0.0
        %1288 = vmatpush.msra.mxu0 0.0
        %1289 = vmatpush.msra.mxu0 0.0
        %1290 = vmatpush.msra.mxu0 0.0
        %1291 = vmatpush.msra.mxu0 0.0
        %1292 = vmatpush.msra.mxu0 0.0
        %1293 = vmatpush.msra.mxu0 0.0
        %1294 = vmatpush.msra.mxu0 0.0
        %1295 = vmatpush.msra.mxu0 0.0
        %1296 = vmatpush.msra.mxu0 %v1280
        %1297 = vmatpush.msra.mxu0 %v1249
        %1298 = vmatmul.f32.gmra.mxu0 %v1273
        %v1299 = vpop.f32.mrf.mxu0
        %v1300 = vadd.f32 0.0, %v1299
        %1301 = vmatmul.f32.gmra.mxu0 %v1276
        %v1302 = vpop.f32.mrf.mxu0
        %v1303 = vadd.f32 0.0, %v1302
        %1304 = vdwg.mxu0
        %v1305 = vld [vmem:[%s6] sm:$0xff]
        %v1306 = vld [vmem:[%s6 + $0x8] sm:$0xff]
        %v1308 = vsel %vm1271, %v1269, 0
        %v1311 = vsel %vm1271, %v1270, 0
        %1313 = vmatpush.msra.mxu0 0.0
        %1314 = vmatpush.msra.mxu0 0.0
        %1315 = vmatpush.msra.mxu0 0.0
        %1316 = vmatpush.msra.mxu0 0.0
        %1317 = vmatpush.msra.mxu0 0.0
        %1318 = vmatpush.msra.mxu0 0.0
        %1319 = vmatpush.msra.mxu0 0.0
        %1320 = vmatpush.msra.mxu0 0.0
        %1321 = vmatpush.msra.mxu0 0.0
        %1322 = vmatpush.msra.mxu0 0.0
        %1323 = vmatpush.msra.mxu0 0.0
        %1324 = vmatpush.msra.mxu0 0.0
        %1325 = vmatpush.msra.mxu0 0.0
        %1326 = vmatpush.msra.mxu0 0.0
        %1327 = vmatpush.msra.mxu0 %v1280
        %1328 = vmatpush.msra.mxu0 %v1249
        %1329 = vmatmul.f32.gmra.mxu0 %v1308
        %v1330 = vpop.f32.mrf.mxu0
        %v1331 = vadd.f32 0.0, %v1330
        %1332 = vmatmul.f32.gmra.mxu0 %v1311
        %v1333 = vpop.f32.mrf.mxu0
        %v1334 = vadd.f32 0.0, %v1333
        %1335 = vdwg.mxu0
        %v1336 = vld [vmem:[%s7] sm:$0xff]
        %v1337 = vld [vmem:[%s7 + $0x8] sm:$0xff]
        %v1339 = vsel %vm1109, %v1331, 0
        %v1342 = vsel %vm1109, %v1334, 0
        %1344 = vmatpush.msra.mxu0 0.0
        %1345 = vmatpush.msra.mxu0 0.0
        %1346 = vmatpush.msra.mxu0 0.0
        %1347 = vmatpush.msra.mxu0 0.0
        %1348 = vmatpush.msra.mxu0 0.0
        %1349 = vmatpush.msra.mxu0 0.0
        %1350 = vmatpush.msra.mxu0 0.0
        %1351 = vmatpush.msra.mxu0 0.0
        %1352 = vmatpush.msra.mxu0 0.0
        %1353 = vmatpush.msra.mxu0 0.0
        %1354 = vmatpush.msra.mxu0 0.0
        %1355 = vmatpush.msra.mxu0 0.0
        %1356 = vmatpush.msra.mxu0 0.0
        %1357 = vmatpush.msra.mxu0 0.0
        %1358 = vmatpush.msra.mxu0 %v1337
        %1359 = vmatpush.msra.mxu0 %v1336
        %1360 = vmatmul.f32.gmra.mxu0 %v1339
        %v1361 = vpop.f32.mrf.mxu0
        %v1362 = vadd.f32 0.0, %v1361
        %1363 = vmatmul.f32.gmra.mxu0 %v1342
        %v1364 = vpop.f32.mrf.mxu0
        %v1365 = vadd.f32 0.0, %v1364
        %1366 = vdwg.mxu0
        %v1368 = vsel %vm1109, %v1300, 0
        %v1371 = vsel %vm1109, %v1303, 0
        %1373 = vmatpush.msra.mxu0 0.0
        %1374 = vmatpush.msra.mxu0 0.0
        %1375 = vmatpush.msra.mxu0 0.0
        %1376 = vmatpush.msra.mxu0 0.0
        %1377 = vmatpush.msra.mxu0 0.0
        %1378 = vmatpush.msra.mxu0 0.0
        %1379 = vmatpush.msra.mxu0 0.0
        %1380 = vmatpush.msra.mxu0 0.0
        %1381 = vmatpush.msra.mxu0 0.0
        %1382 = vmatpush.msra.mxu0 0.0
        %1383 = vmatpush.msra.mxu0 0.0
        %1384 = vmatpush.msra.mxu0 0.0
        %1385 = vmatpush.msra.mxu0 0.0
        %1386 = vmatpush.msra.mxu0 0.0
        %1387 = vmatpush.msra.mxu0 %v1306
        %1388 = vmatpush.msra.mxu0 %v1305
        %1389 = vmatmul.f32.gmra.mxu0 %v1368
        %v1390 = vpop.f32.mrf.mxu0
        %v1391 = vadd.f32 %v1362, %v1390
        %1392 = vmatmul.f32.gmra.mxu0 %v1371
        %v1393 = vpop.f32.mrf.mxu0
        %v1394 = vadd.f32 %v1365, %v1393
        %1395 = vdwg.mxu0
        %v1396 = vld [vmem:[%s8] sm:$0x1]
        %v1398 = vperm.slane %v1396, 0
        %v1400 = vadd.f32 %v1391, %v1398
        %v1401 = vadd.f32 %v1394, %v1398
        %v1402 = vmax.f32 %v1400, 0.0
        %v1403 = vmax.f32 %v1401, 0.0
        %v1404 = vld [vmem:[%s10] sm:$0x3]
        %v1405 = vld [vmem:[%s9] sm:$0xff]
        %v1406 = vld [vmem:[%s9 + $0x8] sm:$0xff]
        %v1407 = vld [vmem:[%s9 + $0x10] sm:$0xff]
        %v1408 = vld [vmem:[%s9 + $0x18] sm:$0xff]
        %v1409 = vld [vmem:[%s9 + $0x20] sm:$0xff]
        %v1410 = vld [vmem:[%s9 + $0x28] sm:$0xff]
        %v1411 = vld [vmem:[%s9 + $0x30] sm:$0xff]
        %v1412 = vld [vmem:[%s9 + $0x38] sm:$0xff]
        %vm1413 = vcmask 261120
        %v1415 = vsel %vm1413, %v1402, 0
        %1417 = vmatpush.msra.mxu0 0.0
        %1418 = vmatpush.msra.mxu0 0.0
        %1419 = vmatpush.msra.mxu0 0.0
        %1420 = vmatpush.msra.mxu0 0.0
        %1421 = vmatpush.msra.mxu0 0.0
        %1422 = vmatpush.msra.mxu0 0.0
        %1423 = vmatpush.msra.mxu0 0.0
        %1424 = vmatpush.msra.mxu0 0.0
        %1425 = vmatpush.msra.mxu0 0.0
        %1426 = vmatpush.msra.mxu0 0.0
        %1427 = vmatpush.msra.mxu0 0.0
        %1428 = vmatpush.msra.mxu0 0.0
        %1429 = vmatpush.msra.mxu0 %v1411
        %1430 = vmatpush.msra.mxu0 %v1409
        %1431 = vmatpush.msra.mxu0 %v1407
        %1432 = vmatpush.msra.mxu0 %v1405
        %1433 = vmatmul.f32.gmra.mxu0 %v1415
        %v1434 = vpop.f32.mrf.mxu0
        %v1435 = vadd.f32 0.0, %v1434
        %1436 = vdwg.mxu0
        %1437 = vmatpush.msra.mxu0 0.0
        %1438 = vmatpush.msra.mxu0 0.0
        %1439 = vmatpush.msra.mxu0 0.0
        %1440 = vmatpush.msra.mxu0 0.0
        %1441 = vmatpush.msra.mxu0 0.0
        %1442 = vmatpush.msra.mxu0 0.0
        %1443 = vmatpush.msra.mxu0 0.0
        %1444 = vmatpush.msra.mxu0 0.0
        %1445 = vmatpush.msra.mxu0 0.0
        %1446 = vmatpush.msra.mxu0 0.0
        %1447 = vmatpush.msra.mxu0 0.0
        %1448 = vmatpush.msra.mxu0 0.0
        %1449 = vmatpush.msra.mxu0 %v1412
        %1450 = vmatpush.msra.mxu0 %v1410
        %1451 = vmatpush.msra.mxu0 %v1408
        %1452 = vmatpush.msra.mxu0 %v1406
        %1453 = vmatmul.f32.gmra.mxu0 %v1415
        %v1454 = vpop.f32.mrf.mxu0
        %v1455 = vadd.f32 0.0, %v1454
        %1456 = vdwg.mxu0
        %v1459 = vrot.slane %v1455, 7
        %vm1460 = vcmask 1040384
        %v1461 = vsel %vm1460, %v1435, %v1459
        %v1463 = vadd.f32 %v1404, %v1461
        %v1464 = vld [vmem:[%s9 + $0x40] sm:$0xff]
        %v1465 = vld [vmem:[%s9 + $0x48] sm:$0xff]
        %v1466 = vld [vmem:[%s9 + $0x50] sm:$0xff]
        %v1467 = vld [vmem:[%s9 + $0x58] sm:$0xff]
        %v1468 = vld [vmem:[%s9 + $0x60] sm:$0xff]
        %v1469 = vld [vmem:[%s9 + $0x68] sm:$0xff]
        %v1470 = vld [vmem:[%s9 + $0x70] sm:$0xff]
        %v1471 = vld [vmem:[%s9 + $0x78] sm:$0xff]
        %v1472 = vrot.slane %v1402, 1
        %v1473 = vsel %vm1413, %v1472, 0
        %1475 = vmatpush.msra.mxu0 0.0
        %1476 = vmatpush.msra.mxu0 0.0
        %1477 = vmatpush.msra.mxu0 0.0
        %1478 = vmatpush.msra.mxu0 0.0
        %1479 = vmatpush.msra.mxu0 0.0
        %1480 = vmatpush.msra.mxu0 0.0
        %1481 = vmatpush.msra.mxu0 0.0
        %1482 = vmatpush.msra.mxu0 0.0
        %1483 = vmatpush.msra.mxu0 0.0
        %1484 = vmatpush.msra.mxu0 0.0
        %1485 = vmatpush.msra.mxu0 0.0
        %1486 = vmatpush.msra.mxu0 0.0
        %1487 = vmatpush.msra.mxu0 %v1470
        %1488 = vmatpush.msra.mxu0 %v1468
        %1489 = vmatpush.msra.mxu0 %v1466
        %1490 = vmatpush.msra.mxu0 %v1464
        %1491 = vmatmul.f32.gmra.mxu0 %v1473
        %v1492 = vpop.f32.mrf.mxu0
        %v1493 = vadd.f32 0.0, %v1492
        %1494 = vdwg.mxu0
        %1495 = vmatpush.msra.mxu0 0.0
        %1496 = vmatpush.msra.mxu0 0.0
        %1497 = vmatpush.msra.mxu0 0.0
        %1498 = vmatpush.msra.mxu0 0.0
        %1499 = vmatpush.msra.mxu0 0.0
        %1500 = vmatpush.msra.mxu0 0.0
        %1501 = vmatpush.msra.mxu0 0.0
        %1502 = vmatpush.msra.mxu0 0.0
        %1503 = vmatpush.msra.mxu0 0.0
        %1504 = vmatpush.msra.mxu0 0.0
        %1505 = vmatpush.msra.mxu0 0.0
        %1506 = vmatpush.msra.mxu0 0.0
        %1507 = vmatpush.msra.mxu0 %v1471
        %1508 = vmatpush.msra.mxu0 %v1469
        %1509 = vmatpush.msra.mxu0 %v1467
        %1510 = vmatpush.msra.mxu0 %v1465
        %1511 = vmatmul.f32.gmra.mxu0 %v1473
        %v1512 = vpop.f32.mrf.mxu0
        %v1513 = vadd.f32 0.0, %v1512
        %1514 = vdwg.mxu0
        %v1517 = vrot.slane %v1513, 7
        %v1518 = vsel %vm1460, %v1493, %v1517
        %v1520 = vadd.f32 %v1463, %v1518
        %v1521 = vld [vmem:[%s9 + $0x80] sm:$0xff]
        %v1522 = vld [vmem:[%s9 + $0x88] sm:$0xff]
        %v1523 = vld [vmem:[%s9 + $0x90] sm:$0xff]
        %v1524 = vld [vmem:[%s9 + $0x98] sm:$0xff]
        %v1525 = vld [vmem:[%s9 + $0xa0] sm:$0xff]
        %v1526 = vld [vmem:[%s9 + $0xa8] sm:$0xff]
        %v1527 = vld [vmem:[%s9 + $0xb0] sm:$0xff]
        %v1528 = vld [vmem:[%s9 + $0xb8] sm:$0xff]
        %v1529 = vrot.slane %v1402, 2
        %v1530 = vsel %vm1413, %v1529, 0
        %1532 = vmatpush.msra.mxu0 0.0
        %1533 = vmatpush.msra.mxu0 0.0
        %1534 = vmatpush.msra.mxu0 0.0
        %1535 = vmatpush.msra.mxu0 0.0
        %1536 = vmatpush.msra.mxu0 0.0
        %1537 = vmatpush.msra.mxu0 0.0
        %1538 = vmatpush.msra.mxu0 0.0
        %1539 = vmatpush.msra.mxu0 0.0
        %1540 = vmatpush.msra.mxu0 0.0
        %1541 = vmatpush.msra.mxu0 0.0
        %1542 = vmatpush.msra.mxu0 0.0
        %1543 = vmatpush.msra.mxu0 0.0
        %1544 = vmatpush.msra.mxu0 %v1527
        %1545 = vmatpush.msra.mxu0 %v1525
        %1546 = vmatpush.msra.mxu0 %v1523
        %1547 = vmatpush.msra.mxu0 %v1521
        %1548 = vmatmul.f32.gmra.mxu0 %v1530
        %v1549 = vpop.f32.mrf.mxu0
        %v1550 = vadd.f32 0.0, %v1549
        %1551 = vdwg.mxu0
        %1552 = vmatpush.msra.mxu0 0.0
        %1553 = vmatpush.msra.mxu0 0.0
        %1554 = vmatpush.msra.mxu0 0.0
        %1555 = vmatpush.msra.mxu0 0.0
        %1556 = vmatpush.msra.mxu0 0.0
        %1557 = vmatpush.msra.mxu0 0.0
        %1558 = vmatpush.msra.mxu0 0.0
        %1559 = vmatpush.msra.mxu0 0.0
        %1560 = vmatpush.msra.mxu0 0.0
        %1561 = vmatpush.msra.mxu0 0.0
        %1562 = vmatpush.msra.mxu0 0.0
        %1563 = vmatpush.msra.mxu0 0.0
        %1564 = vmatpush.msra.mxu0 %v1528
        %1565 = vmatpush.msra.mxu0 %v1526
        %1566 = vmatpush.msra.mxu0 %v1524
        %1567 = vmatpush.msra.mxu0 %v1522
        %1568 = vmatmul.f32.gmra.mxu0 %v1530
        %v1569 = vpop.f32.mrf.mxu0
        %v1570 = vadd.f32 0.0, %v1569
        %1571 = vdwg.mxu0
        %v1574 = vrot.slane %v1570, 7
        %v1575 = vsel %vm1460, %v1550, %v1574
        %v1577 = vadd.f32 %v1520, %v1575
        %v1578 = vld [vmem:[%s9 + $0xc0] sm:$0xff]
        %v1579 = vld [vmem:[%s9 + $0xc8] sm:$0xff]
        %v1580 = vld [vmem:[%s9 + $0xd0] sm:$0xff]
        %v1581 = vld [vmem:[%s9 + $0xd8] sm:$0xff]
        %v1582 = vld [vmem:[%s9 + $0xe0] sm:$0xff]
        %v1583 = vld [vmem:[%s9 + $0xe8] sm:$0xff]
        %v1584 = vld [vmem:[%s9 + $0xf0] sm:$0xff]
        %v1585 = vld [vmem:[%s9 + $0xf8] sm:$0xff]
        %v1586 = vrot.slane %v1402, 3
        %v1587 = vsel %vm1413, %v1586, 0
        %1589 = vmatpush.msra.mxu0 0.0
        %1590 = vmatpush.msra.mxu0 0.0
        %1591 = vmatpush.msra.mxu0 0.0
        %1592 = vmatpush.msra.mxu0 0.0
        %1593 = vmatpush.msra.mxu0 0.0
        %1594 = vmatpush.msra.mxu0 0.0
        %1595 = vmatpush.msra.mxu0 0.0
        %1596 = vmatpush.msra.mxu0 0.0
        %1597 = vmatpush.msra.mxu0 0.0
        %1598 = vmatpush.msra.mxu0 0.0
        %1599 = vmatpush.msra.mxu0 0.0
        %1600 = vmatpush.msra.mxu0 0.0
        %1601 = vmatpush.msra.mxu0 %v1584
        %1602 = vmatpush.msra.mxu0 %v1582
        %1603 = vmatpush.msra.mxu0 %v1580
        %1604 = vmatpush.msra.mxu0 %v1578
        %1605 = vmatmul.f32.gmra.mxu0 %v1587
        %v1606 = vpop.f32.mrf.mxu0
        %v1607 = vadd.f32 0.0, %v1606
        %1608 = vdwg.mxu0
        %1609 = vmatpush.msra.mxu0 0.0
        %1610 = vmatpush.msra.mxu0 0.0
        %1611 = vmatpush.msra.mxu0 0.0
        %1612 = vmatpush.msra.mxu0 0.0
        %1613 = vmatpush.msra.mxu0 0.0
        %1614 = vmatpush.msra.mxu0 0.0
        %1615 = vmatpush.msra.mxu0 0.0
        %1616 = vmatpush.msra.mxu0 0.0
        %1617 = vmatpush.msra.mxu0 0.0
        %1618 = vmatpush.msra.mxu0 0.0
        %1619 = vmatpush.msra.mxu0 0.0
        %1620 = vmatpush.msra.mxu0 0.0
        %1621 = vmatpush.msra.mxu0 %v1585
        %1622 = vmatpush.msra.mxu0 %v1583
        %1623 = vmatpush.msra.mxu0 %v1581
        %1624 = vmatpush.msra.mxu0 %v1579
        %1625 = vmatmul.f32.gmra.mxu0 %v1587
        %v1626 = vpop.f32.mrf.mxu0
        %v1627 = vadd.f32 0.0, %v1626
        %1628 = vdwg.mxu0
        %v1631 = vrot.slane %v1627, 7
        %v1632 = vsel %vm1460, %v1607, %v1631
        %v1634 = vadd.f32 %v1577, %v1632
        %v1635 = vld [vmem:[%s9 + $0x100] sm:$0xff]
        %v1636 = vld [vmem:[%s9 + $0x108] sm:$0xff]
        %v1637 = vld [vmem:[%s9 + $0x110] sm:$0xff]
        %v1638 = vld [vmem:[%s9 + $0x118] sm:$0xff]
        %v1639 = vld [vmem:[%s9 + $0x120] sm:$0xff]
        %v1640 = vld [vmem:[%s9 + $0x128] sm:$0xff]
        %v1641 = vld [vmem:[%s9 + $0x130] sm:$0xff]
        %v1642 = vld [vmem:[%s9 + $0x138] sm:$0xff]
        %v1643 = vrot.slane %v1402, 4
        %v1644 = vsel %vm1413, %v1643, 0
        %1646 = vmatpush.msra.mxu0 0.0
        %1647 = vmatpush.msra.mxu0 0.0
        %1648 = vmatpush.msra.mxu0 0.0
        %1649 = vmatpush.msra.mxu0 0.0
        %1650 = vmatpush.msra.mxu0 0.0
        %1651 = vmatpush.msra.mxu0 0.0
        %1652 = vmatpush.msra.mxu0 0.0
        %1653 = vmatpush.msra.mxu0 0.0
        %1654 = vmatpush.msra.mxu0 0.0
        %1655 = vmatpush.msra.mxu0 0.0
        %1656 = vmatpush.msra.mxu0 0.0
        %1657 = vmatpush.msra.mxu0 0.0
        %1658 = vmatpush.msra.mxu0 %v1641
        %1659 = vmatpush.msra.mxu0 %v1639
        %1660 = vmatpush.msra.mxu0 %v1637
        %1661 = vmatpush.msra.mxu0 %v1635
        %1662 = vmatmul.f32.gmra.mxu0 %v1644
        %v1663 = vpop.f32.mrf.mxu0
        %v1664 = vadd.f32 0.0, %v1663
        %1665 = vdwg.mxu0
        %1666 = vmatpush.msra.mxu0 0.0
        %1667 = vmatpush.msra.mxu0 0.0
        %1668 = vmatpush.msra.mxu0 0.0
        %1669 = vmatpush.msra.mxu0 0.0
        %1670 = vmatpush.msra.mxu0 0.0
        %1671 = vmatpush.msra.mxu0 0.0
        %1672 = vmatpush.msra.mxu0 0.0
        %1673 = vmatpush.msra.mxu0 0.0
        %1674 = vmatpush.msra.mxu0 0.0
        %1675 = vmatpush.msra.mxu0 0.0
        %1676 = vmatpush.msra.mxu0 0.0
        %1677 = vmatpush.msra.mxu0 0.0
        %1678 = vmatpush.msra.mxu0 %v1642
        %1679 = vmatpush.msra.mxu0 %v1640
        %1680 = vmatpush.msra.mxu0 %v1638
        %1681 = vmatpush.msra.mxu0 %v1636
        %1682 = vmatmul.f32.gmra.mxu0 %v1644
        %v1683 = vpop.f32.mrf.mxu0
        %v1684 = vadd.f32 0.0, %v1683
        %1685 = vdwg.mxu0
        %v1688 = vrot.slane %v1684, 7
        %v1689 = vsel %vm1460, %v1664, %v1688
        %v1691 = vadd.f32 %v1634, %v1689
        %v1692 = vld [vmem:[%s9 + $0x140] sm:$0xff]
        %v1693 = vld [vmem:[%s9 + $0x148] sm:$0xff]
        %v1694 = vld [vmem:[%s9 + $0x150] sm:$0xff]
        %v1695 = vld [vmem:[%s9 + $0x158] sm:$0xff]
        %v1696 = vld [vmem:[%s9 + $0x160] sm:$0xff]
        %v1697 = vld [vmem:[%s9 + $0x168] sm:$0xff]
        %v1698 = vld [vmem:[%s9 + $0x170] sm:$0xff]
        %v1699 = vld [vmem:[%s9 + $0x178] sm:$0xff]
        %v1700 = vrot.slane %v1402, 5
        %v1701 = vsel %vm1413, %v1700, 0
        %1703 = vmatpush.msra.mxu0 0.0
        %1704 = vmatpush.msra.mxu0 0.0
        %1705 = vmatpush.msra.mxu0 0.0
        %1706 = vmatpush.msra.mxu0 0.0
        %1707 = vmatpush.msra.mxu0 0.0
        %1708 = vmatpush.msra.mxu0 0.0
        %1709 = vmatpush.msra.mxu0 0.0
        %1710 = vmatpush.msra.mxu0 0.0
        %1711 = vmatpush.msra.mxu0 0.0
        %1712 = vmatpush.msra.mxu0 0.0
        %1713 = vmatpush.msra.mxu0 0.0
        %1714 = vmatpush.msra.mxu0 0.0
        %1715 = vmatpush.msra.mxu0 %v1698
        %1716 = vmatpush.msra.mxu0 %v1696
        %1717 = vmatpush.msra.mxu0 %v1694
        %1718 = vmatpush.msra.mxu0 %v1692
        %1719 = vmatmul.f32.gmra.mxu0 %v1701
        %v1720 = vpop.f32.mrf.mxu0
        %v1721 = vadd.f32 0.0, %v1720
        %1722 = vdwg.mxu0
        %1723 = vmatpush.msra.mxu0 0.0
        %1724 = vmatpush.msra.mxu0 0.0
        %1725 = vmatpush.msra.mxu0 0.0
        %1726 = vmatpush.msra.mxu0 0.0
        %1727 = vmatpush.msra.mxu0 0.0
        %1728 = vmatpush.msra.mxu0 0.0
        %1729 = vmatpush.msra.mxu0 0.0
        %1730 = vmatpush.msra.mxu0 0.0
        %1731 = vmatpush.msra.mxu0 0.0
        %1732 = vmatpush.msra.mxu0 0.0
        %1733 = vmatpush.msra.mxu0 0.0
        %1734 = vmatpush.msra.mxu0 0.0
        %1735 = vmatpush.msra.mxu0 %v1699
        %1736 = vmatpush.msra.mxu0 %v1697
        %1737 = vmatpush.msra.mxu0 %v1695
        %1738 = vmatpush.msra.mxu0 %v1693
        %1739 = vmatmul.f32.gmra.mxu0 %v1701
        %v1740 = vpop.f32.mrf.mxu0
        %v1741 = vadd.f32 0.0, %v1740
        %1742 = vdwg.mxu0
        %v1745 = vrot.slane %v1741, 7
        %v1746 = vsel %vm1460, %v1721, %v1745
        %v1748 = vadd.f32 %v1691, %v1746
        %v1749 = vld [vmem:[%s9 + $0x180] sm:$0xff]
        %v1750 = vld [vmem:[%s9 + $0x188] sm:$0xff]
        %v1751 = vld [vmem:[%s9 + $0x190] sm:$0xff]
        %v1752 = vld [vmem:[%s9 + $0x198] sm:$0xff]
        %v1753 = vld [vmem:[%s9 + $0x1a0] sm:$0xff]
        %v1754 = vld [vmem:[%s9 + $0x1a8] sm:$0xff]
        %v1755 = vld [vmem:[%s9 + $0x1b0] sm:$0xff]
        %v1756 = vld [vmem:[%s9 + $0x1b8] sm:$0xff]
        %v1757 = vrot.slane %v1402, 6
        %v1758 = vsel %vm1413, %v1757, 0
        %1760 = vmatpush.msra.mxu0 0.0
        %1761 = vmatpush.msra.mxu0 0.0
        %1762 = vmatpush.msra.mxu0 0.0
        %1763 = vmatpush.msra.mxu0 0.0
        %1764 = vmatpush.msra.mxu0 0.0
        %1765 = vmatpush.msra.mxu0 0.0
        %1766 = vmatpush.msra.mxu0 0.0
        %1767 = vmatpush.msra.mxu0 0.0
        %1768 = vmatpush.msra.mxu0 0.0
        %1769 = vmatpush.msra.mxu0 0.0
        %1770 = vmatpush.msra.mxu0 0.0
        %1771 = vmatpush.msra.mxu0 0.0
        %1772 = vmatpush.msra.mxu0 %v1755
        %1773 = vmatpush.msra.mxu0 %v1753
        %1774 = vmatpush.msra.mxu0 %v1751
        %1775 = vmatpush.msra.mxu0 %v1749
        %1776 = vmatmul.f32.gmra.mxu0 %v1758
        %v1777 = vpop.f32.mrf.mxu0
        %v1778 = vadd.f32 0.0, %v1777
        %1779 = vdwg.mxu0
        %1780 = vmatpush.msra.mxu0 0.0
        %1781 = vmatpush.msra.mxu0 0.0
        %1782 = vmatpush.msra.mxu0 0.0
        %1783 = vmatpush.msra.mxu0 0.0
        %1784 = vmatpush.msra.mxu0 0.0
        %1785 = vmatpush.msra.mxu0 0.0
        %1786 = vmatpush.msra.mxu0 0.0
        %1787 = vmatpush.msra.mxu0 0.0
        %1788 = vmatpush.msra.mxu0 0.0
        %1789 = vmatpush.msra.mxu0 0.0
        %1790 = vmatpush.msra.mxu0 0.0
        %1791 = vmatpush.msra.mxu0 0.0
        %1792 = vmatpush.msra.mxu0 %v1756
        %1793 = vmatpush.msra.mxu0 %v1754
        %1794 = vmatpush.msra.mxu0 %v1752
        %1795 = vmatpush.msra.mxu0 %v1750
        %1796 = vmatmul.f32.gmra.mxu0 %v1758
        %v1797 = vpop.f32.mrf.mxu0
        %v1798 = vadd.f32 0.0, %v1797
        %1799 = vdwg.mxu0
        %v1802 = vrot.slane %v1798, 7
        %v1803 = vsel %vm1460, %v1778, %v1802
        %v1805 = vadd.f32 %v1748, %v1803
        %v1806 = vld [vmem:[%s9 + $0x1c0] sm:$0xff]
        %v1807 = vld [vmem:[%s9 + $0x1c8] sm:$0xff]
        %v1808 = vld [vmem:[%s9 + $0x1d0] sm:$0xff]
        %v1809 = vld [vmem:[%s9 + $0x1d8] sm:$0xff]
        %v1810 = vld [vmem:[%s9 + $0x1e0] sm:$0xff]
        %v1811 = vld [vmem:[%s9 + $0x1e8] sm:$0xff]
        %v1812 = vld [vmem:[%s9 + $0x1f0] sm:$0xff]
        %v1813 = vld [vmem:[%s9 + $0x1f8] sm:$0xff]
        %v1814 = vrot.slane %v1402, 7
        %v1815 = vsel %vm1413, %v1814, 0
        %1817 = vmatpush.msra.mxu0 0.0
        %1818 = vmatpush.msra.mxu0 0.0
        %1819 = vmatpush.msra.mxu0 0.0
        %1820 = vmatpush.msra.mxu0 0.0
        %1821 = vmatpush.msra.mxu0 0.0
        %1822 = vmatpush.msra.mxu0 0.0
        %1823 = vmatpush.msra.mxu0 0.0
        %1824 = vmatpush.msra.mxu0 0.0
        %1825 = vmatpush.msra.mxu0 0.0
        %1826 = vmatpush.msra.mxu0 0.0
        %1827 = vmatpush.msra.mxu0 0.0
        %1828 = vmatpush.msra.mxu0 0.0
        %1829 = vmatpush.msra.mxu0 %v1812
        %1830 = vmatpush.msra.mxu0 %v1810
        %1831 = vmatpush.msra.mxu0 %v1808
        %1832 = vmatpush.msra.mxu0 %v1806
        %1833 = vmatmul.f32.gmra.mxu0 %v1815
        %v1834 = vpop.f32.mrf.mxu0
        %v1835 = vadd.f32 0.0, %v1834
        %1836 = vdwg.mxu0
        %1837 = vmatpush.msra.mxu0 0.0
        %1838 = vmatpush.msra.mxu0 0.0
        %1839 = vmatpush.msra.mxu0 0.0
        %1840 = vmatpush.msra.mxu0 0.0
        %1841 = vmatpush.msra.mxu0 0.0
        %1842 = vmatpush.msra.mxu0 0.0
        %1843 = vmatpush.msra.mxu0 0.0
        %1844 = vmatpush.msra.mxu0 0.0
        %1845 = vmatpush.msra.mxu0 0.0
        %1846 = vmatpush.msra.mxu0 0.0
        %1847 = vmatpush.msra.mxu0 0.0
        %1848 = vmatpush.msra.mxu0 0.0
        %1849 = vmatpush.msra.mxu0 %v1813
        %1850 = vmatpush.msra.mxu0 %v1811
        %1851 = vmatpush.msra.mxu0 %v1809
        %1852 = vmatpush.msra.mxu0 %v1807
        %1853 = vmatmul.f32.gmra.mxu0 %v1815
        %v1854 = vpop.f32.mrf.mxu0
        %v1855 = vadd.f32 0.0, %v1854
        %1856 = vdwg.mxu0
        %v1859 = vrot.slane %v1855, 7
        %v1860 = vsel %vm1460, %v1835, %v1859
        %v1862 = vadd.f32 %v1805, %v1860
        %v1863 = vld [vmem:[%s9 + $0x200] sm:$0xff]
        %v1864 = vld [vmem:[%s9 + $0x208] sm:$0xff]
        %v1865 = vld [vmem:[%s9 + $0x210] sm:$0xff]
        %v1866 = vld [vmem:[%s9 + $0x218] sm:$0xff]
        %v1867 = vld [vmem:[%s9 + $0x220] sm:$0xff]
        %v1868 = vld [vmem:[%s9 + $0x228] sm:$0xff]
        %v1869 = vld [vmem:[%s9 + $0x230] sm:$0xff]
        %v1870 = vld [vmem:[%s9 + $0x238] sm:$0xff]
        %v1872 = vsel %vm1413, %v1403, 0
        %1874 = vmatpush.msra.mxu0 0.0
        %1875 = vmatpush.msra.mxu0 0.0
        %1876 = vmatpush.msra.mxu0 0.0
        %1877 = vmatpush.msra.mxu0 0.0
        %1878 = vmatpush.msra.mxu0 0.0
        %1879 = vmatpush.msra.mxu0 0.0
        %1880 = vmatpush.msra.mxu0 0.0
        %1881 = vmatpush.msra.mxu0 0.0
        %1882 = vmatpush.msra.mxu0 0.0
        %1883 = vmatpush.msra.mxu0 0.0
        %1884 = vmatpush.msra.mxu0 0.0
        %1885 = vmatpush.msra.mxu0 0.0
        %1886 = vmatpush.msra.mxu0 %v1869
        %1887 = vmatpush.msra.mxu0 %v1867
        %1888 = vmatpush.msra.mxu0 %v1865
        %1889 = vmatpush.msra.mxu0 %v1863
        %1890 = vmatmul.f32.gmra.mxu0 %v1872
        %v1891 = vpop.f32.mrf.mxu0
        %v1892 = vadd.f32 0.0, %v1891
        %1893 = vdwg.mxu0
        %1894 = vmatpush.msra.mxu0 0.0
        %1895 = vmatpush.msra.mxu0 0.0
        %1896 = vmatpush.msra.mxu0 0.0
        %1897 = vmatpush.msra.mxu0 0.0
        %1898 = vmatpush.msra.mxu0 0.0
        %1899 = vmatpush.msra.mxu0 0.0
        %1900 = vmatpush.msra.mxu0 0.0
        %1901 = vmatpush.msra.mxu0 0.0
        %1902 = vmatpush.msra.mxu0 0.0
        %1903 = vmatpush.msra.mxu0 0.0
        %1904 = vmatpush.msra.mxu0 0.0
        %1905 = vmatpush.msra.mxu0 0.0
        %1906 = vmatpush.msra.mxu0 %v1870
        %1907 = vmatpush.msra.mxu0 %v1868
        %1908 = vmatpush.msra.mxu0 %v1866
        %1909 = vmatpush.msra.mxu0 %v1864
        %1910 = vmatmul.f32.gmra.mxu0 %v1872
        %v1911 = vpop.f32.mrf.mxu0
        %v1912 = vadd.f32 0.0, %v1911
        %1913 = vdwg.mxu0
        %v1916 = vrot.slane %v1912, 7
        %v1917 = vsel %vm1460, %v1892, %v1916
        %v1919 = vadd.f32 %v1862, %v1917
        %v1920 = vld [vmem:[%s9 + $0x240] sm:$0xff]
        %v1921 = vld [vmem:[%s9 + $0x248] sm:$0xff]
        %v1922 = vld [vmem:[%s9 + $0x250] sm:$0xff]
        %v1923 = vld [vmem:[%s9 + $0x258] sm:$0xff]
        %v1924 = vld [vmem:[%s9 + $0x260] sm:$0xff]
        %v1925 = vld [vmem:[%s9 + $0x268] sm:$0xff]
        %v1926 = vld [vmem:[%s9 + $0x270] sm:$0xff]
        %v1927 = vld [vmem:[%s9 + $0x278] sm:$0xff]
        %v1928 = vrot.slane %v1403, 1
        %v1929 = vsel %vm1413, %v1928, 0
        %1931 = vmatpush.msra.mxu0 0.0
        %1932 = vmatpush.msra.mxu0 0.0
        %1933 = vmatpush.msra.mxu0 0.0
        %1934 = vmatpush.msra.mxu0 0.0
        %1935 = vmatpush.msra.mxu0 0.0
        %1936 = vmatpush.msra.mxu0 0.0
        %1937 = vmatpush.msra.mxu0 0.0
        %1938 = vmatpush.msra.mxu0 0.0
        %1939 = vmatpush.msra.mxu0 0.0
        %1940 = vmatpush.msra.mxu0 0.0
        %1941 = vmatpush.msra.mxu0 0.0
        %1942 = vmatpush.msra.mxu0 0.0
        %1943 = vmatpush.msra.mxu0 %v1926
        %1944 = vmatpush.msra.mxu0 %v1924
        %1945 = vmatpush.msra.mxu0 %v1922
        %1946 = vmatpush.msra.mxu0 %v1920
        %1947 = vmatmul.f32.gmra.mxu0 %v1929
        %v1948 = vpop.f32.mrf.mxu0
        %v1949 = vadd.f32 0.0, %v1948
        %1950 = vdwg.mxu0
        %1951 = vmatpush.msra.mxu0 0.0
        %1952 = vmatpush.msra.mxu0 0.0
        %1953 = vmatpush.msra.mxu0 0.0
        %1954 = vmatpush.msra.mxu0 0.0
        %1955 = vmatpush.msra.mxu0 0.0
        %1956 = vmatpush.msra.mxu0 0.0
        %1957 = vmatpush.msra.mxu0 0.0
        %1958 = vmatpush.msra.mxu0 0.0
        %1959 = vmatpush.msra.mxu0 0.0
        %1960 = vmatpush.msra.mxu0 0.0
        %1961 = vmatpush.msra.mxu0 0.0
        %1962 = vmatpush.msra.mxu0 0.0
        %1963 = vmatpush.msra.mxu0 %v1927
        %1964 = vmatpush.msra.mxu0 %v1925
        %1965 = vmatpush.msra.mxu0 %v1923
        %1966 = vmatpush.msra.mxu0 %v1921
        %1967 = vmatmul.f32.gmra.mxu0 %v1929
        %v1968 = vpop.f32.mrf.mxu0
        %v1969 = vadd.f32 0.0, %v1968
        %1970 = vdwg.mxu0
        %v1973 = vrot.slane %v1969, 7
        %v1974 = vsel %vm1460, %v1949, %v1973
        %v1976 = vadd.f32 %v1919, %v1974
        %v1977 = vld [vmem:[%s9 + $0x280] sm:$0xff]
        %v1978 = vld [vmem:[%s9 + $0x288] sm:$0xff]
        %v1979 = vld [vmem:[%s9 + $0x290] sm:$0xff]
        %v1980 = vld [vmem:[%s9 + $0x298] sm:$0xff]
        %v1981 = vld [vmem:[%s9 + $0x2a0] sm:$0xff]
        %v1982 = vld [vmem:[%s9 + $0x2a8] sm:$0xff]
        %v1983 = vld [vmem:[%s9 + $0x2b0] sm:$0xff]
        %v1984 = vld [vmem:[%s9 + $0x2b8] sm:$0xff]
        %v1985 = vrot.slane %v1403, 2
        %v1986 = vsel %vm1413, %v1985, 0
        %1988 = vmatpush.msra.mxu0 0.0
        %1989 = vmatpush.msra.mxu0 0.0
        %1990 = vmatpush.msra.mxu0 0.0
        %1991 = vmatpush.msra.mxu0 0.0
        %1992 = vmatpush.msra.mxu0 0.0
        %1993 = vmatpush.msra.mxu0 0.0
        %1994 = vmatpush.msra.mxu0 0.0
        %1995 = vmatpush.msra.mxu0 0.0
        %1996 = vmatpush.msra.mxu0 0.0
        %1997 = vmatpush.msra.mxu0 0.0
        %1998 = vmatpush.msra.mxu0 0.0
        %1999 = vmatpush.msra.mxu0 0.0
        %2000 = vmatpush.msra.mxu0 %v1983
        %2001 = vmatpush.msra.mxu0 %v1981
        %2002 = vmatpush.msra.mxu0 %v1979
        %2003 = vmatpush.msra.mxu0 %v1977
        %2004 = vmatmul.f32.gmra.mxu0 %v1986
        %v2005 = vpop.f32.mrf.mxu0
        %v2006 = vadd.f32 0.0, %v2005
        %2007 = vdwg.mxu0
        %2008 = vmatpush.msra.mxu0 0.0
        %2009 = vmatpush.msra.mxu0 0.0
        %2010 = vmatpush.msra.mxu0 0.0
        %2011 = vmatpush.msra.mxu0 0.0
        %2012 = vmatpush.msra.mxu0 0.0
        %2013 = vmatpush.msra.mxu0 0.0
        %2014 = vmatpush.msra.mxu0 0.0
        %2015 = vmatpush.msra.mxu0 0.0
        %2016 = vmatpush.msra.mxu0 0.0
        %2017 = vmatpush.msra.mxu0 0.0
        %2018 = vmatpush.msra.mxu0 0.0
        %2019 = vmatpush.msra.mxu0 0.0
        %2020 = vmatpush.msra.mxu0 %v1984
        %2021 = vmatpush.msra.mxu0 %v1982
        %2022 = vmatpush.msra.mxu0 %v1980
        %2023 = vmatpush.msra.mxu0 %v1978
        %2024 = vmatmul.f32.gmra.mxu0 %v1986
        %v2025 = vpop.f32.mrf.mxu0
        %v2026 = vadd.f32 0.0, %v2025
        %2027 = vdwg.mxu0
        %v2030 = vrot.slane %v2026, 7
        %v2031 = vsel %vm1460, %v2006, %v2030
        %v2033 = vadd.f32 %v1976, %v2031
        %v2034 = vmax.f32 %v2033, 0.0
        %v2035 = vld [vmem:[%s11] sm:$0xff]
        %v2036 = vld [vmem:[%s11 + $0x8] sm:$0xff]
        %v2037 = vld [vmem:[%s11 + $0x10] sm:$0xff]
        %v2038 = vld [vmem:[%s11 + $0x18] sm:$0xff]
        %v2039 = vld [vmem:[%s11 + $0x20] sm:$0xff]
        %v2040 = vld [vmem:[%s11 + $0x28] sm:$0xff]
        %v2041 = vld [vmem:[%s11 + $0x30] sm:$0xff]
        %v2042 = vld [vmem:[%s11 + $0x38] sm:$0xff]
        %v2043 = vld [vmem:[%s11 + $0x40] sm:$0xff]
        %v2044 = vld [vmem:[%s11 + $0x48] sm:$0xff]
        %v2045 = vld [vmem:[%s11 + $0x50] sm:$0xff]
        %v2046 = vld [vmem:[%s11 + $0x58] sm:$0xff]
        %v2047 = vld [vmem:[%s11 + $0x60] sm:$0xff]
        %v2048 = vld [vmem:[%s11 + $0x68] sm:$0xff]
        %v2049 = vld [vmem:[%s11 + $0x70] sm:$0xff]
        %v2050 = vld [vmem:[%s11 + $0x78] sm:$0xff]
        %v2051 = vld [vmem:[%s11 + $0x80] sm:$0xff]
        %v2052 = vld [vmem:[%s11 + $0x88] sm:$0xff]
        %v2053 = vld [vmem:[%s11 + $0x90] sm:$0xff]
        %v2054 = vld [vmem:[%s11 + $0x98] sm:$0xff]
        %v2055 = vld [vmem:[%s11 + $0xa0] sm:$0xff]
        %v2056 = vld [vmem:[%s11 + $0xa8] sm:$0xff]
        %v2057 = vld [vmem:[%s11 + $0xb0] sm:$0xff]
        %v2058 = vld [vmem:[%s11 + $0xb8] sm:$0xff]
        %v2059 = vld [vmem:[%s11 + $0xc0] sm:$0xff]
        %v2060 = vld [vmem:[%s12] sm:$0x1]
        %v2062 = vperm.slane %v2034, 0
        %v2063 = vperm.slane %v2034, 1
        %vm2065 = vcmask 588800
        %v2066 = vsel %vm2065, %v2063, 0
        %2068 = vmatpush.msra.mxu0 %v2050
        %2069 = vmatpush.msra.mxu0 %v2049
        %2070 = vmatpush.msra.mxu0 %v2048
        %2071 = vmatpush.msra.mxu0 %v2047
        %2072 = vmatpush.msra.mxu0 %v2046
        %2073 = vmatpush.msra.mxu0 %v2045
        %2074 = vmatpush.msra.mxu0 %v2044
        %2075 = vmatpush.msra.mxu0 %v2043
        %2076 = vmatpush.msra.mxu0 %v2042
        %2077 = vmatpush.msra.mxu0 %v2041
        %2078 = vmatpush.msra.mxu0 %v2040
        %2079 = vmatpush.msra.mxu0 %v2039
        %2080 = vmatpush.msra.mxu0 %v2038
        %2081 = vmatpush.msra.mxu0 %v2037
        %2082 = vmatpush.msra.mxu0 %v2036
        %2083 = vmatpush.msra.mxu0 %v2035
        %2084 = vmatmul.f32.gmra.mxu0 %v2062
        %v2085 = vpop.f32.mrf.mxu0
        %v2086 = vadd.f32 %v2060, %v2085
        %2087 = vdwg.mxu0
        %2088 = vmatpush.msra.mxu0 0.0
        %2089 = vmatpush.msra.mxu0 0.0
        %2090 = vmatpush.msra.mxu0 0.0
        %2091 = vmatpush.msra.mxu0 0.0
        %2092 = vmatpush.msra.mxu0 0.0
        %2093 = vmatpush.msra.mxu0 0.0
        %2094 = vmatpush.msra.mxu0 0.0
        %2095 = vmatpush.msra.mxu0 %v2059
        %2096 = vmatpush.msra.mxu0 %v2058
        %2097 = vmatpush.msra.mxu0 %v2057
        %2098 = vmatpush.msra.mxu0 %v2056
        %2099 = vmatpush.msra.mxu0 %v2055
        %2100 = vmatpush.msra.mxu0 %v2054
        %2101 = vmatpush.msra.mxu0 %v2053
        %2102 = vmatpush.msra.mxu0 %v2052
        %2103 = vmatpush.msra.mxu0 %v2051
        %2104 = vmatmul.f32.gmra.mxu0 %v2066
        %v2105 = vpop.f32.mrf.mxu0
        %v2106 = vadd.f32 %v2086, %v2105
        %2107 = vdwg.mxu0
        %v2108 = vmax.f32 %v2106, 0.0
        %v2109 = vld [vmem:[%s13] sm:$0xff]
        %v2110 = vld [vmem:[%s13 + $0x8] sm:$0xff]
        %v2111 = vld [vmem:[%s13 + $0x10] sm:$0xff]
        %v2112 = vld [vmem:[%s13 + $0x18] sm:$0xff]
        %v2113 = vld [vmem:[%s13 + $0x20] sm:$0xff]
        %v2114 = vld [vmem:[%s13 + $0x28] sm:$0xff]
        %v2115 = vld [vmem:[%s13 + $0x30] sm:$0xff]
        %v2116 = vld [vmem:[%s13 + $0x38] sm:$0xff]
        %v2117 = vld [vmem:[%s13 + $0x40] sm:$0xff]
        %v2118 = vld [vmem:[%s13 + $0x48] sm:$0xff]
        %v2119 = vld [vmem:[%s13 + $0x50] sm:$0xff]
        %v2120 = vld [vmem:[%s13 + $0x58] sm:$0xff]
        %v2121 = vld [vmem:[%s13 + $0x60] sm:$0xf]
        %v2122 = vld [vmem:[%s14] sm:$0x1]
        %vm2123 = vcmask 818176
        %v2125 = vsel %vm2123, %v2108, 0
        %v2128 = vsel %vm1040, %v2121, 0
        %2130 = vmatpush.msra.mxu0 0.0
        %2131 = vmatpush.msra.mxu0 0.0
        %2132 = vmatpush.msra.mxu0 0.0
        %2133 = vmatpush.msra.mxu0 %v2128
        %2134 = vmatpush.msra.mxu0 %v2120
        %2135 = vmatpush.msra.mxu0 %v2119
        %2136 = vmatpush.msra.mxu0 %v2118
        %2137 = vmatpush.msra.mxu0 %v2117
        %2138 = vmatpush.msra.mxu0 %v2116
        %2139 = vmatpush.msra.mxu0 %v2115
        %2140 = vmatpush.msra.mxu0 %v2114
        %2141 = vmatpush.msra.mxu0 %v2113
        %2142 = vmatpush.msra.mxu0 %v2112
        %2143 = vmatpush.msra.mxu0 %v2111
        %2144 = vmatpush.msra.mxu0 %v2110
        %2145 = vmatpush.msra.mxu0 %v2109
        %2146 = vmatmul.f32.gmra.mxu0 %v2125
        %v2147 = vpop.f32.mrf.mxu0
        %v2148 = vadd.f32 %v2122, %v2147
        %2149 = vdwg.mxu0
        %v2150 = vmax.f32 %v2148, 0.0
        %v2151 = vld [vmem:[%s15] sm:$0xff]
        %v2152 = vld [vmem:[%s15 + $0x8] sm:$0xff]
        %v2153 = vld [vmem:[%s15 + $0x10] sm:$0xff]
        %v2154 = vld [vmem:[%s15 + $0x18] sm:$0xff]
        %v2155 = vld [vmem:[%s15 + $0x20] sm:$0xff]
        %v2156 = vld [vmem:[%s15 + $0x28] sm:$0xff]
        %v2157 = vld [vmem:[%s15 + $0x30] sm:$0xff]
        %v2158 = vld [vmem:[%s15 + $0x38] sm:$0xff]
        %v2159 = vld [vmem:[%s15 + $0x40] sm:$0xff]
        %v2160 = vld [vmem:[%s15 + $0x48] sm:$0xff]
        %v2161 = vld [vmem:[%s15 + $0x50] sm:$0xff]
        %v2162 = vld [vmem:[%s15 + $0x58] sm:$0xff]
        %v2163 = vld [vmem:[%s15 + $0x60] sm:$0xf]
        %v2164 = vld [vmem:[%s16] sm:$0x1]
        %v2166 = vsel %vm2123, %v2150, 0
        %v2169 = vsel %vm1040, %v2163, 0
        %2171 = vmatpush.msra.mxu0 0.0
        %2172 = vmatpush.msra.mxu0 0.0
        %2173 = vmatpush.msra.mxu0 0.0
        %2174 = vmatpush.msra.mxu0 %v2169
        %2175 = vmatpush.msra.mxu0 %v2162
        %2176 = vmatpush.msra.mxu0 %v2161
        %2177 = vmatpush.msra.mxu0 %v2160
        %2178 = vmatpush.msra.mxu0 %v2159
        %2179 = vmatpush.msra.mxu0 %v2158
        %2180 = vmatpush.msra.mxu0 %v2157
        %2181 = vmatpush.msra.mxu0 %v2156
        %2182 = vmatpush.msra.mxu0 %v2155
        %2183 = vmatpush.msra.mxu0 %v2154
        %2184 = vmatpush.msra.mxu0 %v2153
        %2185 = vmatpush.msra.mxu0 %v2152
        %2186 = vmatpush.msra.mxu0 %v2151
        %2187 = vmatmul.f32.gmra.mxu0 %v2166
        %v2188 = vpop.f32.mrf.mxu0
        %v2189 = vadd.f32 %v2164, %v2188
        %2190 = vdwg.mxu0
        %vm2191 = vcmask 16384
        %v2192 = vsel %vm2191, %v2189, -inf
        %2193 = vmax.xlane.f32.xlu0 %v2192
        %v2194 = vpop.xlane.xlu0 %2193
        %v2195 = vsub.f32 %v2189, %v2194
        %v2196 = vmul.f32 %v2195, 1.442695
        %v2197 = vpow.pop %v2196
        %v2198 = vsel %vm2191, %v2197, 0.0
        %2199 = vadd.xlane.f32.xlu0 %v2198
        %v2200 = vpop.xlane.xlu0 %2199
        %v2201 = vrcp.pop %v2200
        %v2202 = vmul.f32 %v2200, %v2201
        %v2203 = vsub.f32 1.0, %v2202
        %v2204 = vmul.f32 %v2201, %v2203
        %v2205 = vadd.f32 %v2201, %v2204
        %vm2206 = vweird.f32 %v2200
        %vm2207 = vweird.f32 %v2201
        %vm2208 = vmor %vm2206, %vm2207
        %v2209 = vsel %vm2208, %v2201, %v2205
        %v2210 = vand.u32 2147483647, %v2200
        %vm2211 = vcmp.eq.f32.partialorder %v2210, 8.507059e+37
        %v2212 = vand.u32 %v2200, 2147483648
        %v2213 = vor.u32 1.1754944e-38, %v2212
        %v2214 = vsel %vm2211, %v2213, %v2209
        %v2215 = vmul.f32 %v2197, %v2214
        %2216 = vst.msk [vmem:[%s540] sm:$0x1] %vm2191, %v2215
        %s2217 = sand.u32 %s401, 1
        %s2218 = scalar_lea.sflag [#allocation3], %s2217
        %s2219 = sand.u32 %s401, 1
        %s2220 = scalar_lea.vmem [#allocation2], %s2219
        // Predicated region
        $region89: #{net_forward.1} parent=87 // pred_check
          %p2221 = pneg %p411
        $region90: #{net_forward.1} parent=87 // pred_check_branch
          %2223 = sbr.rel (%p2221) target = $region92
        $region91: #{net_forward.1} parent=87 // pred_region
          %2225 = vsyncadd %s2218, 0
          %s2226 = scalar_lea.hbm %s17, %s31
          %s2228 = sshll.u32 %s2220, 4
          %s2229 = int_to_ptr.vmem [resolvable:$true] %s2228
          %s2230 = sshll.u32 %s2226, 4
          %s2231 = int_to_ptr.hbm [resolvable:$true] %s2230
          %2233 = dma.vmem_to_hbm [thread:$0]  %s2229, 16, %s2231, %s2218
        $region92: #{net_forward.1} parent=87 // pred_fallthru
          _
      $region88: #{net_forward.1} parent=5 // pred_fallthru
        _
      %p2234 = scmp.le.s32.totalorder 2, %s26
      // Predicated region
      $region93: #{net_forward.1} parent=5 // pred_check
        %p2235 = pneg %p2234
      $region94: #{net_forward.1} parent=5 // pred_check_branch
        %2237 = sbr.rel (%p2235) target = $region96
      $region95: #{net_forward.1} parent=5 // pred_region
        %s2238 = ssub.s32 %s26, 2
        // Predicated region
        $region97: #{net_forward.1} parent=95 // pred_check
          %p2239 = pneg %p417
        $region98: #{net_forward.1} parent=95 // pred_check_branch
          %2241 = sbr.rel (%p2239) target = $region100
        $region99: #{net_forward.1} parent=95 // pred_region
          %s2242 = sand.u32 %s402, 1
          %s2243 = scalar_lea.sflag [#allocation3], %s2242
          %s2244 = sand.u32 %s402, 1
          %s2245 = scalar_lea.vmem [#allocation2], %s2244
          %2247 = dma.done %s2243, 16
        $region100: #{net_forward.1} parent=95 // pred_fallthru
          _
      $region96: #{net_forward.1} parent=5 // pred_fallthru
        _
    $region6: #{net_forward.1} parent=1 // loop_footer
      %s30 = sadd.s32 1, %s26
    $region7: #{net_forward.1} parent=1 // loop_footer_branch
      %25 = sbr.rel target = $region3
    $region8: #{net_forward.1} parent=1 // loop_exit
      _
    %2248 = vsyncpa [#allocation3], 1
    %s2249 = scalar_lea.sflag [#allocation3], 1
    %2250 = vsyncpa %s2249, 1

</llo_original>
